<compile_context>
chip_gen: v5e
topology: v5e:2x2
jax: 0.10.0
libtpu: 0.0.40
codegen_flags: <defaults>
</compile_context>

<pallas_src>
import numpy as np
import jax
import jax.numpy as jnp
from jax.experimental import pallas as pl
from jax.experimental.pallas import tpu as pltpu

LN_EPS = 1e-5  # torch.nn.LayerNorm default eps


def _layernorm_rows(y, eps=LN_EPS):
    # LayerNorm(dim, elementwise_affine=False) over the LAST dim (host-side latents path).
    mean = jnp.mean(y, axis=-1, keepdims=True)
    var = jnp.mean(jnp.square(y - mean), axis=-1, keepdims=True)
    return (y - mean) * jax.lax.rsqrt(var + eps)


def _pad8(n):
    return -(-n // 8) * 8


_TILE_CANDIDATES = (2048, 1024, 512, 256, 128)


def _vmem_config():
    """(vmem_limit_bytes, block_budget_bytes) picked per TPU generation."""
    try:
        vmem_cap = pltpu.get_tpu_info().vmem_capacity_bytes
    except Exception:  # API drift / non-TPU tracing -> conservative default
        vmem_cap = 128 * 1024 * 1024
    if vmem_cap <= 64 * 1024 * 1024:
        # v7x: 64 MiB per TensorCore; leave headroom for compiler scratch + temporaries.
        return 40 * 1024 * 1024, 24 * 1024 * 1024
    # v5e / v6e: 128 MiB physical (scoped default is only 16/32 MiB -> raise explicitly).
    return 96 * 1024 * 1024, 64 * 1024 * 1024


def _pick_tile_l(L, B, C, dz, kp1, csz, budget):
    """Largest L-tile (multiple of 128, dividing L) whose *real* VMEM use fits `budget`,
    preferring tiles that give >= 4 total grid steps (>= 2 per v7x TensorCore)."""
    def vmem_bytes(t):
        # double-buffered HBM<->VMEM blocks: x, three (kp1, t) outputs (sublane padded), S
        blocks = 2 * 4 * t * (C + 3 * _pad8(kp1) + csz)
        # in-kernel f32 temporaries: aT(dz,t), logits/e/weights/logp (kp1,t), s(t,csz)
        temps = 4 * t * (_pad8(dz) + 4 * _pad8(kp1) + csz)
        return blocks + temps

    fitting = [t for t in _TILE_CANDIDATES if L % t == 0 and vmem_bytes(t) <= budget]
    for t in fitting:                       # descending: largest tile with >= 4 steps
        if B * (L // t) >= 4:
            return t
    if fitting:                             # tiny L: maximize steps with the smallest tile
        return fitting[-1]
    # TODO(synk): pad L up to a multiple of 128 for large non-aligned L instead of this
    # single whole-L block fallback (disables pipelining / megacore split).
    return L


# ---------------------------------------------------------------------------
# Fused selection kernel (transposed / lane-dense orientation).
# One grid step = one batch row x TILE_L cells.
# ---------------------------------------------------------------------------
def _selection_kernel(x_ref, wa_ref, ba_ref, lat_ref, spr_ref,
                      w_ref, logits_ref, logp_ref, s_ref):
    # x_ref:      (1, C, TL)   one batch row, TL cells (PyTorch (B, C, L) layout)
    # wa_ref:     (C, dz)      anchors Linear weight;  ba_ref: (dz, 1) bias (transposed)
    # lat_ref:    (K+1, dz)    normalized latents, pre-scaled by 1/sqrt(dz)
    # spr_ref:    (K+1, 4*H*W) flattened [prototypes; masks] sprite stack
    # w_ref / logits_ref / logp_ref: (1, K+1, TL)   lane-dense small outputs
    # s_ref:      (TL, 4*H*W)  (or (1, TL, 4*H*W) on the fallback layout)
    x = x_ref[0]                                                       # (C, TL)

    # anchors Linear, transposed: aT = W^T x  -> (dz, TL); lane axis fully dense.
    a_t = jax.lax.dot_general(wa_ref[...], x,
                              dimension_numbers=(((0,), (0,)), ((), ())),
                              preferred_element_type=jnp.float32)      # (dz, TL)
    a_t = a_t + ba_ref[...]                                            # bias broadcast over TL
    # LayerNorm over dz (sublane axis).
    mu = jnp.mean(a_t, axis=0, keepdims=True)
    var = jnp.mean(jnp.square(a_t - mu), axis=0, keepdims=True)
    a_t = (a_t - mu) * jax.lax.rsqrt(var + LN_EPS)

    # logits^T = (latents / sqrt(dz)) @ aT   -> (K+1, TL)
    logits_t = jnp.dot(lat_ref[...], a_t, preferred_element_type=jnp.float32)

    # softmax / log_softmax over the sprite axis (sublanes).
    m = jnp.max(logits_t, axis=0, keepdims=True)
    e = jnp.exp(logits_t - m)
    denom = jnp.sum(e, axis=0, keepdims=True)
    weights_t = e * pl.reciprocal(denom, approx=True)                  # EUP vrcp, ~free
    logp_t = (logits_t - m) - jnp.log(denom)

    # Lane-dense, full-width stores (no 6/128 masked vst.msk).
    w_ref[0] = weights_t
    logits_ref[0] = logits_t
    logp_ref[0] = logp_t

    # S[l] = weights[l] @ sprite_flat (transposed-LHS contraction -> no explicit transpose),
    # written straight into the final (L, B, ...) layout.
    s = jax.lax.dot_general(weights_t, spr_ref[...],
                            dimension_numbers=(((0,), (0,)), ((), ())),
                            preferred_element_type=jnp.float32)        # (TL, 4HW)
    s_ref[...] = s.reshape(s_ref.shape)


# ---------------------------------------------------------------------------
# Wrapper: Selection.forward (training mode, group == 1)
# ---------------------------------------------------------------------------
def selection_forward(x, params, prototypes, masks, flat_latents, *, tile_l=None):
    B, C, L = x.shape
    dz = params["W_anc"].shape[1]
    K, _, H, W = prototypes.shape
    Kp1 = K + 1
    Csz = 4 * H * W

    # --- latents path: tiny (K, dim_sprites) Linear + LayerNorm -> plain XLA (no launch)
    lat = jnp.dot(flat_latents, params["W_lin"]) + params["b_lin"]
    lat = _layernorm_rows(lat)
    lat = jnp.concatenate([lat, params["blank_latent"]], axis=0)        # (K+1, dz)
    lat_scaled = lat * np.float32(1.0 / np.sqrt(dz))                    # fold 1/sqrt(dz)

    # --- sprite stack (pure data rearrangement glue)
    zp = jnp.zeros_like(prototypes[:1])
    zm = jnp.zeros_like(masks[:1])
    sprite = jnp.concatenate(
        [jnp.concatenate([prototypes, zp], axis=0),
         jnp.concatenate([masks, zm], axis=0)], axis=1)                 # (K+1, 4, H, W)
    sprite_flat = sprite.reshape(Kp1, Csz)

    ba_t = params["b_anc"].reshape(1, dz).T                             # (dz, 1)

    # --- generation-aware VMEM budget + tiling over cells
    vmem_limit, block_budget = _vmem_config()
    if tile_l is None:
        tile_l = _pick_tile_l(L, B, C, dz, Kp1, Csz, block_budget)
    assert L % tile_l == 0, (L, tile_l)
    num_lt = L // tile_l

    # S goes out pre-permuted as (L, B*Csz) when the lane dim is aligned (or B == 1);
    # otherwise fall back to (B, L, Csz) + a host transpose.
    s_direct = (B == 1) or (Csz % 128 == 0)

    kp1_shape = jax.ShapeDtypeStruct((B, Kp1, L), jnp.float32)
    kp1_spec = pl.BlockSpec((1, Kp1, tile_l), lambda b, lt: (b, 0, lt))
    if s_direct:
        s_shape = jax.ShapeDtypeStruct((L, B * Csz), jnp.float32)
        s_spec = pl.BlockSpec((tile_l, Csz), lambda b, lt: (lt, b))
    else:
        s_shape = jax.ShapeDtypeStruct((B, L, Csz), jnp.float32)
        s_spec = pl.BlockSpec((1, tile_l, Csz), lambda b, lt: (b, lt, 0))

    n_rows = B * L
    cost = pl.CostEstimate(
        flops=2 * n_rows * (C * dz + dz * Kp1 + Kp1 * Csz),
        transcendentals=n_rows * (Kp1 + 3),
        bytes_accessed=4 * (n_rows * (C + 3 * Kp1 + Csz)
                            + C * dz + dz + Kp1 * dz + Kp1 * Csz),
    )

    w_t, logits_t, logp_t, s_out = pl.pallas_call(
        _selection_kernel,
        grid=(B, num_lt),
        in_specs=[
            pl.BlockSpec((1, C, tile_l), lambda b, lt: (b, 0, lt)),     # x, kept (B, C, L)
            pl.BlockSpec((C, dz), lambda b, lt: (0, 0)),                # W_anc
            pl.BlockSpec((dz, 1), lambda b, lt: (0, 0)),                # b_anc^T
            pl.BlockSpec((Kp1, dz), lambda b, lt: (0, 0)),              # latents / sqrt(dz)
            pl.BlockSpec((Kp1, Csz), lambda b, lt: (0, 0)),             # sprite_flat
        ],
        out_specs=(kp1_spec, kp1_spec, kp1_spec, s_spec),
        out_shape=(kp1_shape, kp1_shape, kp1_shape, s_shape),
        compiler_params=pltpu.CompilerParams(
            dimension_semantics=("parallel", "parallel"),   # shard across TCs on v7x
            vmem_limit_bytes=vmem_limit,
        ),
        cost_estimate=cost,
    )(x, params["W_anc"], ba_t, lat_scaled, sprite_flat)

    # --- output plumbing (tiny (K+1)-wide transposes; free reshapes for the big S)
    weights = jnp.transpose(w_t, (0, 2, 1)).reshape(B * L, Kp1)
    logits = jnp.transpose(logits_t, (0, 2, 1)).reshape(B * L, Kp1)
    log_probs = jnp.transpose(logp_t, (2, 0, 1))                        # (L, B, K+1)
    if s_direct:
        S = s_out.reshape(L, B, 4, H, W)                                # already (L, B, ...)
    else:
        S = jnp.transpose(s_out.reshape(B, L, 4, H, W), (1, 0, 2, 3, 4))
    return {"w": weights, "logits": logits, "log_probs": log_probs, "S": S}


# ---------------------------------------------------------------------------
# Pure-JAX full-f32 reference (mirrors the PyTorch module) for verification
# ---------------------------------------------------------------------------
def selection_reference(x, params, prototypes, masks, flat_latents):
    hp = jax.lax.Precision.HIGHEST
    B, C, L = x.shape
    dz = params["W_anc"].shape[1]
    lat = jnp.dot(flat_latents, params["W_lin"], precision=hp) + params["b_lin"]
    lat = _layernorm_rows(lat)
    lat = jnp.concatenate([lat, params["blank_latent"]], axis=0)
    x_flat = jnp.transpose(x, (0, 2, 1)).reshape(B * L, C)
    a = jnp.dot(x_flat, params["W_anc"], precision=hp) + params["b_anc"]
    a = _layernorm_rows(a)
    logits = jnp.dot(a, lat.T, precision=hp) / np.sqrt(dz)
    weights = jax.nn.softmax(logits, axis=-1)
    Kp1 = logits.shape[-1]
    log_probs = jax.nn.log_softmax(
        jnp.transpose(logits.reshape(B, L, Kp1), (1, 0, 2)), axis=2)
    zp = jnp.zeros_like(prototypes[:1])
    zm = jnp.zeros_like(masks[:1])
    sprite = jnp.concatenate(
        [jnp.concatenate([prototypes, zp], 0), jnp.concatenate([masks, zm], 0)], axis=1)
    S = jnp.sum(weights[..., None, None, None] * sprite[None, ...], axis=1)
    _, Cs, H, W = S.shape
    S = jnp.transpose(S.reshape(B, L, Cs, H, W), (1, 0, 2, 3, 4))
    return {"w": weights, "logits": logits, "log_probs": log_probs, "S": S}


if __name__ == "__main__":
    # small, module-consistent shapes (x is (B, dim_enc, L) = encoder features per cell)
    B = 2
    dim_enc = 32
    dim_sprites = 24
    dim_z = min(dim_enc, dim_sprites)   # 24
    K = 5                               # sprites (blank appended -> K+1)
    H = W = 8                           # sprite spatial size -> 4*H*W = 256 (lane-aligned)
    L = 512                             # cells; auto-picked tile_l=256 -> grid (2, 2)

    key = jax.random.PRNGKey(0)
    ks = jax.random.split(key, 9)

    params = {
        "blank_latent": jax.random.normal(ks[0], (1, dim_z), jnp.float32),
        # stored pre-transposed for x @ W convention (PyTorch Linear does x @ W.T)
        "W_lin": 0.1 * jax.random.normal(ks[1], (dim_sprites, dim_z), jnp.float32),
        "b_lin": 0.1 * jax.random.normal(ks[2], (1, dim_z), jnp.float32),
        "W_anc": 0.1 * jax.random.normal(ks[3], (dim_enc, dim_z), jnp.float32),
        "b_anc": 0.1 * jax.random.normal(ks[4], (1, dim_z), jnp.float32),
    }

    x = jax.random.normal(ks[5], (B, dim_enc, L), jnp.float32)
    prototypes = jax.random.uniform(ks[6], (K, 3, H, W), jnp.float32)
    masks = jax.random.uniform(ks[7], (K, 1, H, W), jnp.float32)
    flat_latents = jax.random.normal(ks[8], (K, dim_sprites), jnp.float32)

    fwd = jax.jit(selection_forward)
    out = fwd(x, params, prototypes, masks, flat_latents)
    jax.block_until_ready(out)

    ref = selection_reference(x, params, prototypes, masks, flat_latents)
    # Kernel dots run at default MXU precision and softmax uses approx reciprocal;
    # the reference is full-f32 HIGHEST, so allow ~2e-2.
    for name in ("w", "logits", "log_probs", "S"):
        assert out[name].shape == ref[name].shape, (name, out[name].shape, ref[name].shape)
        np.testing.assert_allclose(np.asarray(out[name]), np.asarray(ref[name]),
                                   rtol=2e-2, atol=2e-2)

    assert out["w"].shape == (B * L, K + 1)
    assert out["logits"].shape == (B * L, K + 1)
    assert out["log_probs"].shape == (L, B, K + 1)
    assert out["S"].shape == (L, B, 4, H, W)

    print("KERNEL_OK")
</pallas_src>

<mosaic_0001>
module attributes {stable_mosaic.version = 11 : i64} {
  func.func @_selection_kernel(%arg0: i32, %arg1: i32, %arg2: memref<1x32x256xf32, #tpu.memory_space<vmem>>, %arg3: memref<32x24xf32, #tpu.memory_space<vmem>>, %arg4: memref<24x1xf32, #tpu.memory_space<vmem>>, %arg5: memref<6x24xf32, #tpu.memory_space<vmem>>, %arg6: memref<6x256xf32, #tpu.memory_space<vmem>>, %arg7: memref<1x6x256xf32, #tpu.memory_space<vmem>>, %arg8: memref<1x6x256xf32, #tpu.memory_space<vmem>>, %arg9: memref<1x6x256xf32, #tpu.memory_space<vmem>>, %arg10: memref<256x256xf32, #tpu.memory_space<vmem>>) attributes {dimension_semantics = [#tpu.dimension_semantics<parallel>, #tpu.dimension_semantics<parallel>], iteration_bounds = array<i64: 2, 2>, scalar_prefetch = 0 : i64, scratch_operands = 0 : i64, tpu.core_type = #tpu.core_type<tc>, window_params = [{transform_indices = @transform_0, window_bounds = array<i64: 1, 32, 256>}, {pipeline_mode = #tpu.pipeline_mode<synchronous>, transform_indices = @transform_1, window_bounds = array<i64: 32, 24>}, {pipeline_mode = #tpu.pipeline_mode<synchronous>, transform_indices = @transform_2, window_bounds = array<i64: 24, 1>}, {pipeline_mode = #tpu.pipeline_mode<synchronous>, transform_indices = @transform_3, window_bounds = array<i64: 6, 24>}, {pipeline_mode = #tpu.pipeline_mode<synchronous>, transform_indices = @transform_4, window_bounds = array<i64: 6, 256>}, {transform_indices = @transform_5, window_bounds = array<i64: 1, 6, 256>}, {transform_indices = @transform_6, window_bounds = array<i64: 1, 6, 256>}, {transform_indices = @transform_7, window_bounds = array<i64: 1, 6, 256>}, {transform_indices = @transform_8, window_bounds = array<i64: 256, 256>}]} {
    %c0 = arith.constant 0 : index
    %c0_0 = arith.constant 0 : index
    %c0_1 = arith.constant 0 : index
    %0 = vector.load %arg2[%c0, %c0_0, %c0_1] : memref<1x32x256xf32, #tpu.memory_space<vmem>>, vector<1x32x256xf32>
    %1 = vector.shape_cast %0 : vector<1x32x256xf32> to vector<32x256xf32>
    %c0_2 = arith.constant 0 : index
    %c0_3 = arith.constant 0 : index
    %2 = vector.load %arg3[%c0_2, %c0_3] : memref<32x24xf32, #tpu.memory_space<vmem>>, vector<32x24xf32>
    %cst = arith.constant dense<0.000000e+00> : vector<24x256xf32>
    %3 = tpu.matmul %2, %1, %cst {dimension_numbers = #tpu.dot_dimension_numbers<[0], [0], [1], [1], [0, 1, 1, 1], [], []>} : vector<32x24xf32>, vector<32x256xf32>, vector<24x256xf32> -> vector<24x256xf32>
    %c0_4 = arith.constant 0 : index
    %c0_5 = arith.constant 0 : index
    %4 = vector.load %arg4[%c0_4, %c0_5] : memref<24x1xf32, #tpu.memory_space<vmem>>, vector<24x1xf32>
    %5 = vector.broadcast %4 : vector<24x1xf32> to vector<24x256xf32>
    %6 = arith.addf %3, %5 : vector<24x256xf32>
    %cst_6 = arith.constant dense<0.000000e+00> : vector<256xf32>
    %7 = vector.multi_reduction <add>, %6, %cst_6 [0] : vector<24x256xf32> to vector<256xf32>
    %8 = vector.shape_cast %7 : vector<256xf32> to vector<1x256xf32>
    %cst_7 = arith.constant 2.400000e+01 : f32
    %9 = vector.broadcast %cst_7 : f32 to vector<1x256xf32>
    %10 = arith.divf %8, %9 : vector<1x256xf32>
    %11 = vector.broadcast %10 : vector<1x256xf32> to vector<24x256xf32>
    %12 = arith.subf %6, %11 : vector<24x256xf32>
    %13 = arith.mulf %12, %12 : vector<24x256xf32>
    %cst_8 = arith.constant dense<0.000000e+00> : vector<256xf32>
    %14 = vector.multi_reduction <add>, %13, %cst_8 [0] : vector<24x256xf32> to vector<256xf32>
    %15 = vector.shape_cast %14 : vector<256xf32> to vector<1x256xf32>
    %cst_9 = arith.constant 2.400000e+01 : f32
    %16 = vector.broadcast %cst_9 : f32 to vector<1x256xf32>
    %17 = arith.divf %15, %16 : vector<1x256xf32>
    %18 = vector.broadcast %10 : vector<1x256xf32> to vector<24x256xf32>
    %19 = arith.subf %6, %18 : vector<24x256xf32>
    %cst_10 = arith.constant 9.99999974E-6 : f32
    %20 = vector.broadcast %cst_10 : f32 to vector<1x256xf32>
    %21 = arith.addf %17, %20 : vector<1x256xf32>
    %22 = math.rsqrt %21 : vector<1x256xf32>
    %23 = vector.broadcast %22 : vector<1x256xf32> to vector<24x256xf32>
    %24 = arith.mulf %19, %23 : vector<24x256xf32>
    %c0_11 = arith.constant 0 : index
    %c0_12 = arith.constant 0 : index
    %25 = vector.load %arg5[%c0_11, %c0_12] : memref<6x24xf32, #tpu.memory_space<vmem>>, vector<6x24xf32>
    %cst_13 = arith.constant dense<0.000000e+00> : vector<6x256xf32>
    %26 = tpu.matmul %25, %24, %cst_13 {dimension_numbers = #tpu.dot_dimension_numbers<[1], [0], [0], [1], [0, 0, 1, 1], [], []>} : vector<6x24xf32>, vector<24x256xf32>, vector<6x256xf32> -> vector<6x256xf32>
    %cst_14 = arith.constant dense<0xFF800000> : vector<256xf32>
    %27 = vector.multi_reduction <maximumf>, %26, %cst_14 [0] : vector<6x256xf32> to vector<256xf32>
    %28 = vector.shape_cast %27 : vector<256xf32> to vector<1x256xf32>
    %29 = vector.broadcast %28 : vector<1x256xf32> to vector<6x256xf32>
    %30 = arith.subf %26, %29 : vector<6x256xf32>
    %31 = math.exp %30 : vector<6x256xf32>
    %cst_15 = arith.constant dense<0.000000e+00> : vector<256xf32>
    %32 = vector.multi_reduction <add>, %31, %cst_15 [0] : vector<6x256xf32> to vector<256xf32>
    %33 = vector.shape_cast %32 : vector<256xf32> to vector<1x256xf32>
    %34 = tpu.reciprocal %33 {approx = true} : vector<1x256xf32> -> vector<1x256xf32>
    %35 = vector.broadcast %34 : vector<1x256xf32> to vector<6x256xf32>
    %36 = arith.mulf %31, %35 : vector<6x256xf32>
    %37 = vector.broadcast %28 : vector<1x256xf32> to vector<6x256xf32>
    %38 = arith.subf %26, %37 : vector<6x256xf32>
    %39 = math.log %33 : vector<1x256xf32>
    %40 = vector.broadcast %39 : vector<1x256xf32> to vector<6x256xf32>
    %41 = arith.subf %38, %40 : vector<6x256xf32>
    %c0_16 = arith.constant 0 : index
    %c0_17 = arith.constant 0 : index
    %c0_18 = arith.constant 0 : index
    %42 = vector.load %arg7[%c0_16, %c0_17, %c0_18] : memref<1x6x256xf32, #tpu.memory_space<vmem>>, vector<1x6x256xf32>
    %43 = vector.shape_cast %42 : vector<1x6x256xf32> to vector<6x256xf32>
    %44 = vector.shape_cast %36 : vector<6x256xf32> to vector<1x6x256xf32>
    tpu.vector_store %arg7[%c0_16, %c0_17, %c0_18], %44 {strides = array<i32>} : memref<1x6x256xf32, #tpu.memory_space<vmem>>, vector<1x6x256xf32>,
    %c0_19 = arith.constant 0 : index
    %c0_20 = arith.constant 0 : index
    %c0_21 = arith.constant 0 : index
    %45 = vector.load %arg8[%c0_19, %c0_20, %c0_21] : memref<1x6x256xf32, #tpu.memory_space<vmem>>, vector<1x6x256xf32>
    %46 = vector.shape_cast %45 : vector<1x6x256xf32> to vector<6x256xf32>
    %47 = vector.shape_cast %26 : vector<6x256xf32> to vector<1x6x256xf32>
    tpu.vector_store %arg8[%c0_19, %c0_20, %c0_21], %47 {strides = array<i32>} : memref<1x6x256xf32, #tpu.memory_space<vmem>>, vector<1x6x256xf32>,
    %c0_22 = arith.constant 0 : index
    %c0_23 = arith.constant 0 : index
    %c0_24 = arith.constant 0 : index
    %48 = vector.load %arg9[%c0_22, %c0_23, %c0_24] : memref<1x6x256xf32, #tpu.memory_space<vmem>>, vector<1x6x256xf32>
    %49 = vector.shape_cast %48 : vector<1x6x256xf32> to vector<6x256xf32>
    %50 = vector.shape_cast %41 : vector<6x256xf32> to vector<1x6x256xf32>
    tpu.vector_store %arg9[%c0_22, %c0_23, %c0_24], %50 {strides = array<i32>} : memref<1x6x256xf32, #tpu.memory_space<vmem>>, vector<1x6x256xf32>,
    %c0_25 = arith.constant 0 : index
    %c0_26 = arith.constant 0 : index
    %51 = vector.load %arg6[%c0_25, %c0_26] : memref<6x256xf32, #tpu.memory_space<vmem>>, vector<6x256xf32>
    %cst_27 = arith.constant dense<0.000000e+00> : vector<256x256xf32>
    %52 = tpu.matmul %36, %51, %cst_27 {dimension_numbers = #tpu.dot_dimension_numbers<[0], [0], [1], [1], [0, 1, 1, 1], [], []>} : vector<6x256xf32>, vector<6x256xf32>, vector<256x256xf32> -> vector<256x256xf32>
    %c0_28 = arith.constant 0 : index
    %c0_29 = arith.constant 0 : index
    %53 = vector.load %arg10[%c0_28, %c0_29] : memref<256x256xf32, #tpu.memory_space<vmem>>, vector<256x256xf32>
    tpu.vector_store %arg10[%c0_28, %c0_29], %52 {strides = array<i32>} : memref<256x256xf32, #tpu.memory_space<vmem>>, vector<256x256xf32>,
    return
  }
  func.func @transform_0(%arg0: i32, %arg1: i32) -> (i32, i32, i32) {
    %c0_i32 = arith.constant 0 : i32
    %c0_i32_0 = arith.constant 0 : i32
    return %arg0, %c0_i32, %arg1 : i32, i32, i32
  }
  func.func @transform_1(%arg0: i32, %arg1: i32) -> (i32, i32) {
    %c0_i32 = arith.constant 0 : i32
    %c0_i32_0 = arith.constant 0 : i32
    %c0_i32_1 = arith.constant 0 : i32
    return %c0_i32, %c0_i32_0 : i32, i32
  }
  func.func @transform_2(%arg0: i32, %arg1: i32) -> (i32, i32) {
    %c0_i32 = arith.constant 0 : i32
    %c0_i32_0 = arith.constant 0 : i32
    %c0_i32_1 = arith.constant 0 : i32
    return %c0_i32, %c0_i32_0 : i32, i32
  }
  func.func @transform_3(%arg0: i32, %arg1: i32) -> (i32, i32) {
    %c0_i32 = arith.constant 0 : i32
    %c0_i32_0 = arith.constant 0 : i32
    %c0_i32_1 = arith.constant 0 : i32
    return %c0_i32, %c0_i32_0 : i32, i32
  }
  func.func @transform_4(%arg0: i32, %arg1: i32) -> (i32, i32) {
    %c0_i32 = arith.constant 0 : i32
    %c0_i32_0 = arith.constant 0 : i32
    %c0_i32_1 = arith.constant 0 : i32
    return %c0_i32, %c0_i32_0 : i32, i32
  }
  func.func @transform_5(%arg0: i32, %arg1: i32) -> (i32, i32, i32) {
    %c0_i32 = arith.constant 0 : i32
    %c0_i32_0 = arith.constant 0 : i32
    return %arg0, %c0_i32, %arg1 : i32, i32, i32
  }
  func.func @transform_6(%arg0: i32, %arg1: i32) -> (i32, i32, i32) {
    %c0_i32 = arith.constant 0 : i32
    %c0_i32_0 = arith.constant 0 : i32
    return %arg0, %c0_i32, %arg1 : i32, i32, i32
  }
  func.func @transform_7(%arg0: i32, %arg1: i32) -> (i32, i32, i32) {
    %c0_i32 = arith.constant 0 : i32
    %c0_i32_0 = arith.constant 0 : i32
    return %arg0, %c0_i32, %arg1 : i32, i32, i32
  }
  func.func @transform_8(%arg0: i32, %arg1: i32) -> (i32, i32) {
    %c0_i32 = arith.constant 0 : i32
    return %arg1, %arg0 : i32, i32
  }
}

</mosaic_0001>

<llo_original>
// kernel: selection_forward.1
$region0: #{selection_forward.1}
  #allocation0 [shape = 'u32[]', space=smem, size = 0x4, offset = 0x4, fixed_abs, tag = 'smem constant byte address 0x4 - core index']
  #allocation1 [shape = 'u32[72,128]{1,0:T(1,128)}', space=vmem, size = 0x9000, scoped, tag = 'internal scratch']
  %s0 = inlined_call_operand.vmem [shape: f32[2,32,512], index: 0, kind: input, shape index: {}]
  %s1 = inlined_call_operand.vmem [shape: f32[32,24], index: 1, kind: input, shape index: {}]
  %s2 = inlined_call_operand.vmem [shape: f32[24,1], index: 2, kind: input, shape index: {}]
  %s3 = inlined_call_operand.vmem [shape: f32[6,24], index: 3, kind: input, shape index: {}]
  %s4 = inlined_call_operand.vmem [shape: f32[6,256], index: 4, kind: input, shape index: {}]
  %s5 = inlined_call_operand.hbm [shape: f32[2,6,512], index: 5, kind: output, shape index: {0}]
  %s6 = inlined_call_operand.hbm [shape: f32[2,6,512], index: 6, kind: output, shape index: {1}]
  %s7 = inlined_call_operand.vmem [shape: f32[2,6,512], index: 7, kind: output, shape index: {2}]
  %s8 = inlined_call_operand.vmem [shape: f32[512,512], index: 8, kind: output, shape index: {3}]
  %9 = xla_tuple %s5, %s6, %s7, %s8
  %s10 = sld [smem:[#allocation0]]
  $region119: #{selection_forward.1} parent=0
    _
  %s12 = ssub.s32 1, %s10
  %s13 = scalar_select 0, %s12, %s10
  $region1: #{selection_forward.1} parent=0
    #allocation2 [shape = 'u8[65536]{0}', space=vmem, size = 0x10000, scoped, tag = 'input window, operand 0']
    #allocation3 [shape = 'u8[16384]{0}', space=vmem, size = 0x4000, scoped, tag = 'output window, operand 0']
    #allocation4 [shape = 's32[2]{0}', space=sflag, size = 0x8, scoped, tag = 'scoped memory for selection_forward.1']
    #allocation5 [shape = 'u8[16384]{0}', space=vmem, size = 0x4000, scoped, tag = 'output window, operand 1']
    #allocation6 [shape = 's32[2]{0}', space=sflag, size = 0x8, scoped, tag = 'scoped memory for selection_forward.1']
    #allocation7 [shape = 'u8[524288]{0}', space=vmem, size = 0x80000, scoped, tag = 'output window, operand 3']
    %14 = vsyncpa [#allocation4], 0
    %s15 = scalar_lea.sflag [#allocation4], 1
    %16 = vsyncpa %s15, 0
    %17 = vsyncpa [#allocation6], 0
    %s18 = scalar_lea.sflag [#allocation6], 1
    %19 = vsyncpa %s18, 0
    loop: start=0, step=1, limit=6
    $region2: #{selection_forward.1} parent=1 // loop_pre_header
      _
    $region3: #{selection_forward.1} parent=1 // loop_header
      %s21 = sphi 0, %s25
      %p22 = scmp.ge.s32.totalorder %s21, 6
      %s28 = sphi 0, %s40
      %s29 = sphi 0, %s36
      %s30 = sphi 0, %s28
      %s31 = sphi 0, %s29
      %s32 = sphi 0, %s30
      %s33 = sphi 0, %s31
      %s45 = sphi 0, %s47
      %s48 = sphi 0, %s45
      %s49 = sphi 0, %s48
      %s65 = sphi 0, %s49
      %s69 = sphi 0, %s69
      %s71 = sphi 0, %s69
      %s72 = sphi 0, %s71
      %s86 = sphi 0, %s72
      %s90 = sphi 0, %s90
      %s92 = sphi 0, %s90
      %s93 = sphi 0, %s92
      %s107 = sphi 0, %s93
      %s111 = sphi 0, %s111
      %s113 = sphi 0, %s111
      %s114 = sphi 0, %s113
      %s128 = sphi 0, %s114
      %s132 = sphi 0, %s132
      %s134 = sphi 0, %s132
      %s135 = sphi 0, %s134
      %s149 = sphi 0, %s135
      %s157 = sphi 0, %s159
      %s160 = sphi 0, %s157
      %s161 = sphi 0, %s160
      %s177 = sphi 0, %s161
      %s185 = sphi 0, %s187
      %s188 = sphi 0, %s185
      %s189 = sphi 0, %s188
      %s205 = sphi 0, %s189
      %s213 = sphi 0, %s215
      %s216 = sphi 0, %s213
      %s217 = sphi 0, %s216
      %s233 = sphi 0, %s217
      %s241 = sphi 0, %s243
      %s244 = sphi 0, %s241
      %s245 = sphi 0, %s244
      %s261 = sphi 0, %s245
    $region4: #{selection_forward.1} parent=1 // loop_header_branch
      %24 = sbr.rel (%p22) target = $region8
    $region5: #{selection_forward.1} parent=1 // loop_body
      %s26 = ssub.s32 %s21, 1
      %s27 = ssub.s32 %s21, 2
      %s34 = sadd.s32 1, %s29
      %p35 = scmp.ge.s32.totalorder %s34, 2
      %s36 = scalar_select %p35, 0, %s34
      %s37 = sadd.s32 1, %s28
      %s38 = scalar_select %p35, %s37, %s28
      %p39 = scmp.ge.s32.totalorder %s38, 2
      %s40 = scalar_select %p39, 0, %s38
      %s41 = ssub.s32 %s28, %s40
      %s42 = ssub.s32 %s29, %s36
      %s43 = sor.u32 %s41, %s42
      %p44 = scmp.eq.s32.totalorder %s43, 0
      %s46 = sadd.s32 %s45, 1
      %s47 = scalar_select %p44, %s45, %s46
      %p50 = pneg %p44
      %p51 = scmp.eq.s32.totalorder %s21, 3
      %p52 = por %p50, %p51
      %p53 = scmp.ne.s32.totalorder %s45, %s48
      %p54 = scmp.eq.s32.totalorder %s21, 0
      %p55 = por %p53, %p54
      %p56 = scmp.ne.s32.totalorder %s45, %s48
      %p57 = scmp.eq.s32.totalorder %s26, 3
      %p58 = por %p56, %p57
      %p59 = scmp.ne.s32.totalorder %s48, %s49
      %p60 = scmp.eq.s32.totalorder %s26, 0
      %p61 = por %p59, %p60
      %p62 = scmp.ne.s32.totalorder %s48, %s49
      %p63 = scmp.eq.s32.totalorder %s27, 3
      %p64 = por %p62, %p63
      %p66 = scmp.ne.s32.totalorder %s49, %s65
      %p67 = scmp.eq.s32.totalorder %s27, 0
      %p68 = por %p66, %p67
      %s70 = sadd.s32 %s69, 1
      %p73 = scmp.eq.s32.totalorder %s21, 3
      %p74 = scmp.ne.s32.totalorder %s69, %s71
      %p75 = scmp.eq.s32.totalorder %s21, 0
      %p76 = por %p74, %p75
      %p77 = scmp.ne.s32.totalorder %s69, %s71
      %p78 = scmp.eq.s32.totalorder %s26, 3
      %p79 = por %p77, %p78
      %p80 = scmp.ne.s32.totalorder %s71, %s72
      %p81 = scmp.eq.s32.totalorder %s26, 0
      %p82 = por %p80, %p81
      %p83 = scmp.ne.s32.totalorder %s71, %s72
      %p84 = scmp.eq.s32.totalorder %s27, 3
      %p85 = por %p83, %p84
      %p87 = scmp.ne.s32.totalorder %s72, %s86
      %p88 = scmp.eq.s32.totalorder %s27, 0
      %p89 = por %p87, %p88
      %s91 = sadd.s32 %s90, 1
      %p94 = scmp.eq.s32.totalorder %s21, 3
      %p95 = scmp.ne.s32.totalorder %s90, %s92
      %p96 = scmp.eq.s32.totalorder %s21, 0
      %p97 = por %p95, %p96
      %p98 = scmp.ne.s32.totalorder %s90, %s92
      %p99 = scmp.eq.s32.totalorder %s26, 3
      %p100 = por %p98, %p99
      %p101 = scmp.ne.s32.totalorder %s92, %s93
      %p102 = scmp.eq.s32.totalorder %s26, 0
      %p103 = por %p101, %p102
      %p104 = scmp.ne.s32.totalorder %s92, %s93
      %p105 = scmp.eq.s32.totalorder %s27, 3
      %p106 = por %p104, %p105
      %p108 = scmp.ne.s32.totalorder %s93, %s107
      %p109 = scmp.eq.s32.totalorder %s27, 0
      %p110 = por %p108, %p109
      %s112 = sadd.s32 %s111, 1
      %p115 = scmp.eq.s32.totalorder %s21, 3
      %p116 = scmp.ne.s32.totalorder %s111, %s113
      %p117 = scmp.eq.s32.totalorder %s21, 0
      %p118 = por %p116, %p117
      %p119 = scmp.ne.s32.totalorder %s111, %s113
      %p120 = scmp.eq.s32.totalorder %s26, 3
      %p121 = por %p119, %p120
      %p122 = scmp.ne.s32.totalorder %s113, %s114
      %p123 = scmp.eq.s32.totalorder %s26, 0
      %p124 = por %p122, %p123
      %p125 = scmp.ne.s32.totalorder %s113, %s114
      %p126 = scmp.eq.s32.totalorder %s27, 3
      %p127 = por %p125, %p126
      %p129 = scmp.ne.s32.totalorder %s114, %s128
      %p130 = scmp.eq.s32.totalorder %s27, 0
      %p131 = por %p129, %p130
      %s133 = sadd.s32 %s132, 1
      %p136 = scmp.eq.s32.totalorder %s21, 3
      %p137 = scmp.ne.s32.totalorder %s132, %s134
      %p138 = scmp.eq.s32.totalorder %s21, 0
      %p139 = por %p137, %p138
      %p140 = scmp.ne.s32.totalorder %s132, %s134
      %p141 = scmp.eq.s32.totalorder %s26, 3
      %p142 = por %p140, %p141
      %p143 = scmp.ne.s32.totalorder %s134, %s135
      %p144 = scmp.eq.s32.totalorder %s26, 0
      %p145 = por %p143, %p144
      %p146 = scmp.ne.s32.totalorder %s134, %s135
      %p147 = scmp.eq.s32.totalorder %s27, 3
      %p148 = por %p146, %p147
      %p150 = scmp.ne.s32.totalorder %s135, %s149
      %p151 = scmp.eq.s32.totalorder %s27, 0
      %p152 = por %p150, %p151
      %s153 = ssub.s32 %s28, %s40
      %s154 = ssub.s32 %s29, %s36
      %s155 = sor.u32 %s153, %s154
      %p156 = scmp.eq.s32.totalorder %s155, 0
      %s158 = sadd.s32 %s157, 1
      %s159 = scalar_select %p156, %s157, %s158
      %p162 = pneg %p156
      %p163 = scmp.eq.s32.totalorder %s21, 3
      %p164 = por %p162, %p163
      %p165 = scmp.ne.s32.totalorder %s157, %s160
      %p166 = scmp.eq.s32.totalorder %s21, 0
      %p167 = por %p165, %p166
      %p168 = scmp.ne.s32.totalorder %s157, %s160
      %p169 = scmp.eq.s32.totalorder %s26, 3
      %p170 = por %p168, %p169
      %p171 = scmp.ne.s32.totalorder %s160, %s161
      %p172 = scmp.eq.s32.totalorder %s26, 0
      %p173 = por %p171, %p172
      %p174 = scmp.ne.s32.totalorder %s160, %s161
      %p175 = scmp.eq.s32.totalorder %s27, 3
      %p176 = por %p174, %p175
      %p178 = scmp.ne.s32.totalorder %s161, %s177
      %p179 = scmp.eq.s32.totalorder %s27, 0
      %p180 = por %p178, %p179
      %s181 = ssub.s32 %s28, %s40
      %s182 = ssub.s32 %s29, %s36
      %s183 = sor.u32 %s181, %s182
      %p184 = scmp.eq.s32.totalorder %s183, 0
      %s186 = sadd.s32 %s185, 1
      %s187 = scalar_select %p184, %s185, %s186
      %p190 = pneg %p184
      %p191 = scmp.eq.s32.totalorder %s21, 3
      %p192 = por %p190, %p191
      %p193 = scmp.ne.s32.totalorder %s185, %s188
      %p194 = scmp.eq.s32.totalorder %s21, 0
      %p195 = por %p193, %p194
      %p196 = scmp.ne.s32.totalorder %s185, %s188
      %p197 = scmp.eq.s32.totalorder %s26, 3
      %p198 = por %p196, %p197
      %p199 = scmp.ne.s32.totalorder %s188, %s189
      %p200 = scmp.eq.s32.totalorder %s26, 0
      %p201 = por %p199, %p200
      %p202 = scmp.ne.s32.totalorder %s188, %s189
      %p203 = scmp.eq.s32.totalorder %s27, 3
      %p204 = por %p202, %p203
      %p206 = scmp.ne.s32.totalorder %s189, %s205
      %p207 = scmp.eq.s32.totalorder %s27, 0
      %p208 = por %p206, %p207
      %s209 = ssub.s32 %s28, %s40
      %s210 = ssub.s32 %s29, %s36
      %s211 = sor.u32 %s209, %s210
      %p212 = scmp.eq.s32.totalorder %s211, 0
      %s214 = sadd.s32 %s213, 1
      %s215 = scalar_select %p212, %s213, %s214
      %p218 = pneg %p212
      %p219 = scmp.eq.s32.totalorder %s21, 3
      %p220 = por %p218, %p219
      %p221 = scmp.ne.s32.totalorder %s213, %s216
      %p222 = scmp.eq.s32.totalorder %s21, 0
      %p223 = por %p221, %p222
      %p224 = scmp.ne.s32.totalorder %s213, %s216
      %p225 = scmp.eq.s32.totalorder %s26, 3
      %p226 = por %p224, %p225
      %p227 = scmp.ne.s32.totalorder %s216, %s217
      %p228 = scmp.eq.s32.totalorder %s26, 0
      %p229 = por %p227, %p228
      %p230 = scmp.ne.s32.totalorder %s216, %s217
      %p231 = scmp.eq.s32.totalorder %s27, 3
      %p232 = por %p230, %p231
      %p234 = scmp.ne.s32.totalorder %s217, %s233
      %p235 = scmp.eq.s32.totalorder %s27, 0
      %p236 = por %p234, %p235
      %s237 = ssub.s32 %s29, %s36
      %s238 = ssub.s32 %s28, %s40
      %s239 = sor.u32 %s237, %s238
      %p240 = scmp.eq.s32.totalorder %s239, 0
      %s242 = sadd.s32 %s241, 1
      %s243 = scalar_select %p240, %s241, %s242
      %p246 = pneg %p240
      %p247 = scmp.eq.s32.totalorder %s21, 3
      %p248 = por %p246, %p247
      %p249 = scmp.ne.s32.totalorder %s241, %s244
      %p250 = scmp.eq.s32.totalorder %s21, 0
      %p251 = por %p249, %p250
      %p252 = scmp.ne.s32.totalorder %s241, %s244
      %p253 = scmp.eq.s32.totalorder %s26, 3
      %p254 = por %p252, %p253
      %p255 = scmp.ne.s32.totalorder %s244, %s245
      %p256 = scmp.eq.s32.totalorder %s26, 0
      %p257 = por %p255, %p256
      %p258 = scmp.ne.s32.totalorder %s244, %s245
      %p259 = scmp.eq.s32.totalorder %s27, 3
      %p260 = por %p258, %p259
      %p262 = scmp.ne.s32.totalorder %s245, %s261
      %p263 = scmp.eq.s32.totalorder %s27, 0
      %p264 = por %p262, %p263
      %p265 = scmp.le.s32.totalorder 1, %s21
      %p266 = scmp.lt.s32.totalorder %s21, 5
      %p267 = pnand %p265, %p266
      %p268 = pneg %p267
      // Predicated region
      $region9: #{selection_forward.1} parent=5 // pred_check
        _
      $region10: #{selection_forward.1} parent=5 // pred_check_branch
        %270 = sbr.rel (%p267) target = $region12
      $region11: #{selection_forward.1} parent=5 // pred_region
        %s271 = ssub.s32 %s21, 1
        // Predicated region
        $region13: #{selection_forward.1} parent=11 // pred_check
          %p272 = pneg %p82
        $region14: #{selection_forward.1} parent=11 // pred_check_branch
          %274 = sbr.rel (%p272) target = $region16
        $region15: #{selection_forward.1} parent=11 // pred_region
          _
        $region16: #{selection_forward.1} parent=11 // pred_fallthru
          _
        // Predicated region
        $region17: #{selection_forward.1} parent=11 // pred_check
          %p275 = pneg %p103
        $region18: #{selection_forward.1} parent=11 // pred_check_branch
          %277 = sbr.rel (%p275) target = $region20
        $region19: #{selection_forward.1} parent=11 // pred_region
          _
        $region20: #{selection_forward.1} parent=11 // pred_fallthru
          _
        // Predicated region
        $region21: #{selection_forward.1} parent=11 // pred_check
          %p278 = pneg %p124
        $region22: #{selection_forward.1} parent=11 // pred_check_branch
          %280 = sbr.rel (%p278) target = $region24
        $region23: #{selection_forward.1} parent=11 // pred_region
          _
        $region24: #{selection_forward.1} parent=11 // pred_fallthru
          _
        // Predicated region
        $region25: #{selection_forward.1} parent=11 // pred_check
          %p281 = pneg %p145
        $region26: #{selection_forward.1} parent=11 // pred_check_branch
          %283 = sbr.rel (%p281) target = $region28
        $region27: #{selection_forward.1} parent=11 // pred_region
          _
        $region28: #{selection_forward.1} parent=11 // pred_fallthru
          _
      $region12: #{selection_forward.1} parent=5 // pred_fallthru
        _
      %p284 = scmp.lt.s32.totalorder %s21, 4
      // Predicated region
      $region29: #{selection_forward.1} parent=5 // pred_check
        %p285 = pneg %p284
      $region30: #{selection_forward.1} parent=5 // pred_check_branch
        %287 = sbr.rel (%p285) target = $region32
      $region31: #{selection_forward.1} parent=5 // pred_region
        // Predicated region
        $region33: #{selection_forward.1} parent=31 // pred_check
          %p288 = pneg %p55
        $region34: #{selection_forward.1} parent=31 // pred_check_branch
          %290 = sbr.rel (%p288) target = $region36
        $region35: #{selection_forward.1} parent=31 // pred_region
          %s291 = sand.u32 %s45, 1
          %s292 = sand.u32 %s45, 1
          %s293 = smul.addr %s292, 64
          %s294 = scalar_lea.vmem [#allocation2], %s293
          %s295 = smul.u32 2, %s29
          %s296 = smul.addr %s28, 16
          %s297 = sadd.s32 %s295, %s296
          %s298 = smul.addr %s297, 8
          %s299 = scalar_lea.vmem %s0, %s298
          // Predicated region
          $region37: #{selection_forward.1} parent=35 // pred_check
            _
          $region38: #{selection_forward.1} parent=35 // pred_check_branch
            %301 = sbr.rel (0) target = $region40
          $region39: #{selection_forward.1} parent=35 // pred_region
            // Predicated region
            $region41: #{selection_forward.1} parent=39 // pred_check
              _
            $region42: #{selection_forward.1} parent=39 // pred_check_branch
              %303 = sbr.rel (0) target = $region44
            $region43: #{selection_forward.1} parent=39 // pred_region
              loop: start=0, step=1, limit=1
              $region45: #{selection_forward.1} parent=43 // loop_pre_header
                _
              $region46: #{selection_forward.1} parent=43 // loop_header
                %s305 = sphi 0, %s309
                %p306 = scmp.ge.s32.totalorder %s305, 1
                %s310 = sphi %s299, %s299
                %s311 = sphi %s294, %s294
              $region47: #{selection_forward.1} parent=43 // loop_header_branch
                %308 = sbr.rel (%p306) target = $region51
              $region48: #{selection_forward.1} parent=43 // loop_body
                %v312 = vld [vmem:[%s310] sm:$0xff]
                %313 = vst [vmem:[%s311] sm:$0xff] %v312
                %v314 = vld [vmem:[%s310 + $0x8] sm:$0xff]
                %315 = vst [vmem:[%s311 + $0x8] sm:$0xff] %v314
                %v316 = vld [vmem:[%s310 + $0x20] sm:$0xff]
                %317 = vst [vmem:[%s311 + $0x10] sm:$0xff] %v316
                %v318 = vld [vmem:[%s310 + $0x28] sm:$0xff]
                %319 = vst [vmem:[%s311 + $0x18] sm:$0xff] %v318
                %v320 = vld [vmem:[%s310 + $0x40] sm:$0xff]
                %321 = vst [vmem:[%s311 + $0x20] sm:$0xff] %v320
                %v322 = vld [vmem:[%s310 + $0x48] sm:$0xff]
                %323 = vst [vmem:[%s311 + $0x28] sm:$0xff] %v322
                %v324 = vld [vmem:[%s310 + $0x60] sm:$0xff]
                %325 = vst [vmem:[%s311 + $0x30] sm:$0xff] %v324
                %v326 = vld [vmem:[%s310 + $0x68] sm:$0xff]
                %327 = vst [vmem:[%s311 + $0x38] sm:$0xff] %v326
              $region49: #{selection_forward.1} parent=43 // loop_footer
                %s309 = sadd.s32 1, %s305
              $region50: #{selection_forward.1} parent=43 // loop_footer_branch
                %304 = sbr.rel target = $region46
              $region51: #{selection_forward.1} parent=43 // loop_exit
                _
            $region44: #{selection_forward.1} parent=39 // pred_fallthru
              _
            // Predicated region
            $region52: #{selection_forward.1} parent=39 // pred_check
              _
            $region53: #{selection_forward.1} parent=39 // pred_check_branch
              %329 = sbr.rel target = $region55
            $region54: #{selection_forward.1} parent=39 // pred_region
              _
            $region55: #{selection_forward.1} parent=39 // pred_fallthru
              _
          $region40: #{selection_forward.1} parent=35 // pred_fallthru
            _
          %330 = vnop
        $region36: #{selection_forward.1} parent=31 // pred_fallthru
          _
      $region32: #{selection_forward.1} parent=5 // pred_fallthru
        _
      %p331 = scmp.le.s32.totalorder 1, %s21
      %p332 = scmp.lt.s32.totalorder %s21, 5
      %p333 = pnand %p331, %p332
      %p334 = pneg %p333
      // Predicated region
      $region56: #{selection_forward.1} parent=5 // pred_check
        _
      $region57: #{selection_forward.1} parent=5 // pred_check_branch
        %336 = sbr.rel (%p333) target = $region59
      $region58: #{selection_forward.1} parent=5 // pred_region
        %s337 = ssub.s32 %s21, 1
        %s338 = sand.u32 %s48, 1
        %s339 = sand.u32 %s48, 1
        %s340 = smul.addr %s339, 64
        %s341 = scalar_lea.vmem [#allocation2], %s340
        // Predicated region
        $region60: #{selection_forward.1} parent=58 // pred_check
          %p342 = pneg %p61
        $region61: #{selection_forward.1} parent=58 // pred_check_branch
          %344 = sbr.rel (%p342) target = $region63
        $region62: #{selection_forward.1} parent=58 // pred_region
          _
        $region63: #{selection_forward.1} parent=58 // pred_fallthru
          _
        %s345 = sand.u32 %s48, 1
        %s346 = sand.u32 %s48, 1
        %s347 = smul.addr %s346, 64
        %s348 = scalar_lea.vmem [#allocation2], %s347
        %p349 = pneg %p61
        %p350 = pneg %p58
        %p351 = pneg %p82
        %p352 = pneg %p79
        %p353 = pneg %p103
        %p354 = pneg %p100
        %p355 = pneg %p124
        %p356 = pneg %p121
        %p357 = pneg %p145
        %p358 = pneg %p142
        %p359 = pneg %p173
        %p360 = pneg %p170
        %s361 = sand.u32 %s160, 1
        %s362 = scalar_lea.sflag [#allocation4], %s361
        %s363 = sand.u32 %s160, 1
        %s364 = smul.addr %s363, 16
        %s365 = scalar_lea.vmem [#allocation3], %s364
        %p366 = pneg %p201
        %p367 = pneg %p198
        %s368 = sand.u32 %s188, 1
        %s369 = scalar_lea.sflag [#allocation6], %s368
        %s370 = sand.u32 %s188, 1
        %s371 = smul.addr %s370, 16
        %s372 = scalar_lea.vmem [#allocation5], %s371
        %p373 = pneg %p229
        %p374 = pneg %p226
        %s375 = smul.u32 2, %s31
        %p376 = scmp.lt.s32.totalorder %s30, 1
        %s377 = scalar_select %p376, %s30, 1
        %p378 = scmp.lt.s32.totalorder %s375, 3
        %s379 = scalar_select %p378, %s375, 3
        %s380 = smul.addr %s377, 4
        %s381 = sadd.s32 %s379, %s380
        %s382 = smul.addr %s381, 8
        %s383 = scalar_lea.vmem %s7, %s382
        %p384 = pneg %p257
        %p385 = pneg %p254
        %s386 = sand.u32 %s244, 1
        %s387 = sand.u32 %s244, 1
        %s388 = smul.addr %s387, 512
        %s389 = scalar_lea.vmem [#allocation7], %s388
        %s390 = smul.u32 2, %s31
        %s391 = smul.u32 2, %s31
        %s392 = smul.u32 2, %s31
        %s393 = smul.u32 2, %s31
        %p394 = scmp.lt.s32.totalorder %s30, 1
        %s395 = scalar_select %p394, %s30, 1
        %p396 = scmp.lt.s32.totalorder %s393, 3
        %s397 = scalar_select %p396, %s393, 3
        %s398 = smul.addr %s395, 4
        %s399 = sadd.s32 %s397, %s398
        %s400 = smul.addr %s399, 8
        %s401 = scalar_lea.vmem %s7, %s400
        %s402 = smul.u32 2, %s31
        %s403 = smul.u32 32, %s31
        %s404 = smul.u32 2, %s30
        %v405 = vld [vmem:[%s341] sm:$0xff]
        %v406 = vld [vmem:[%s341 + $0x8] sm:$0xff]
        %v407 = vld [vmem:[%s341 + $0x10] sm:$0xff]
        %v408 = vld [vmem:[%s341 + $0x18] sm:$0xff]
        %v409 = vld [vmem:[%s341 + $0x20] sm:$0xff]
        %v410 = vld [vmem:[%s341 + $0x28] sm:$0xff]
        %v411 = vld [vmem:[%s341 + $0x30] sm:$0xff]
        %v412 = vld [vmem:[%s341 + $0x38] sm:$0xff]
        %v413 = vld [vmem:[%s1] sm:$0xff]
        %v414 = vld [vmem:[%s1 + $0x8] sm:$0xff]
        %v415 = vld [vmem:[%s1 + $0x10] sm:$0xff]
        %v416 = vld [vmem:[%s1 + $0x18] sm:$0xff]
        %v417 = vld [vmem:[%s2] sm:$0xff]
        %v418 = vld [vmem:[%s2 + $0x8] sm:$0xff]
        %v419 = vld [vmem:[%s2 + $0x10] sm:$0xff]
        %421 = vset.pattern.permute.xlu0 0
        %422 = vperm.xlu0 %421, %v417
        %v423 = vpop.permute.xlu0 %422
        %426 = vset.pattern.permute.xlu0 0
        %427 = vperm.xlu0 %426, %v418
        %v428 = vpop.permute.xlu0 %427
        %431 = vset.pattern.permute.xlu0 0
        %432 = vperm.xlu0 %431, %v419
        %v433 = vpop.permute.xlu0 %432
        %435 = vxpose.xlu0.b32.start [1/16] %v413, 128
        %436 = vxpose.xlu0.b32.cont [2/16] %v414, 128
        %437 = vxpose.xlu0.b32.cont [3/16] %v415, 128
        %438 = vxpose.xlu0.b32.cont [4/16] %v416, 128
        %439 = vxpose.xlu0.b32.cont [5/16] 0.0, 128
        %440 = vxpose.xlu0.b32.cont [6/16] 0.0, 128
        %441 = vxpose.xlu0.b32.cont [7/16] 0.0, 128
        %442 = vxpose.xlu0.b32.cont [8/16] 0.0, 128
        %443 = vxpose.xlu0.b32.cont [9/16] 0.0, 128
        %444 = vxpose.xlu0.b32.cont [10/16] 0.0, 128
        %445 = vxpose.xlu0.b32.cont [11/16] 0.0, 128
        %446 = vxpose.xlu0.b32.cont [12/16] 0.0, 128
        %447 = vxpose.xlu0.b32.cont [13/16] 0.0, 128
        %448 = vxpose.xlu0.b32.cont [14/16] 0.0, 128
        %449 = vxpose.xlu0.b32.cont [15/16] 0.0, 128
        %450 = vxpose.xlu0.b32.end [16/16] 0.0, 128
        %v451 = vpop.trf.xlu0
        %v452 = vpop.trf.xlu0
        %v453 = vpop.trf.xlu0
        %v454 = vpop.trf.xlu0
        %v455 = vpop.trf.xlu0
        %v456 = vpop.trf.xlu0
        %v457 = vpop.trf.xlu0
        %v458 = vpop.trf.xlu0
        %v459 = vpop.trf.xlu0
        %v460 = vpop.trf.xlu0
        %v461 = vpop.trf.xlu0
        %v462 = vpop.trf.xlu0
        %v463 = vpop.trf.xlu0
        %v464 = vpop.trf.xlu0
        %v465 = vpop.trf.xlu0
        %v466 = vpop.trf.xlu0
        %vm467 = vcmask 261120
        %v469 = vsel %vm467, %v451, 0
        %v472 = vsel %vm467, %v452, 0
        %v475 = vsel %vm467, %v453, 0
        %477 = vmatpush.msra.mxu0 0.0
        %478 = vmatpush.msra.mxu0 0.0
        %479 = vmatpush.msra.mxu0 0.0
        %480 = vmatpush.msra.mxu0 0.0
        %481 = vmatpush.msra.mxu0 0.0
        %482 = vmatpush.msra.mxu0 0.0
        %483 = vmatpush.msra.mxu0 0.0
        %484 = vmatpush.msra.mxu0 0.0
        %485 = vmatpush.msra.mxu0 0.0
        %486 = vmatpush.msra.mxu0 0.0
        %487 = vmatpush.msra.mxu0 0.0
        %488 = vmatpush.msra.mxu0 0.0
        %489 = vmatpush.msra.mxu0 %v411
        %490 = vmatpush.msra.mxu0 %v409
        %491 = vmatpush.msra.mxu0 %v407
        %492 = vmatpush.msra.mxu0 %v405
        %493 = vmatmul.f32.gmra.mxu0 %v469
        %v494 = vpop.f32.mrf.mxu0
        %v495 = vadd.f32 %v423, %v494
        %496 = vmatmul.f32.gmra.mxu0 %v472
        %v497 = vpop.f32.mrf.mxu0
        %v498 = vadd.f32 %v428, %v497
        %499 = vmatmul.f32.gmra.mxu0 %v475
        %v500 = vpop.f32.mrf.mxu0
        %v501 = vadd.f32 %v433, %v500
        %502 = vdwg.mxu0
        %503 = vmatpush.msra.mxu0 0.0
        %504 = vmatpush.msra.mxu0 0.0
        %505 = vmatpush.msra.mxu0 0.0
        %506 = vmatpush.msra.mxu0 0.0
        %507 = vmatpush.msra.mxu0 0.0
        %508 = vmatpush.msra.mxu0 0.0
        %509 = vmatpush.msra.mxu0 0.0
        %510 = vmatpush.msra.mxu0 0.0
        %511 = vmatpush.msra.mxu0 0.0
        %512 = vmatpush.msra.mxu0 0.0
        %513 = vmatpush.msra.mxu0 0.0
        %514 = vmatpush.msra.mxu0 0.0
        %515 = vmatpush.msra.mxu0 %v412
        %516 = vmatpush.msra.mxu0 %v410
        %517 = vmatpush.msra.mxu0 %v408
        %518 = vmatpush.msra.mxu0 %v406
        %519 = vmatmul.f32.gmra.mxu0 %v469
        %v520 = vpop.f32.mrf.mxu0
        %v521 = vadd.f32 %v423, %v520
        %522 = vmatmul.f32.gmra.mxu0 %v472
        %v523 = vpop.f32.mrf.mxu0
        %v524 = vadd.f32 %v428, %v523
        %525 = vmatmul.f32.gmra.mxu0 %v475
        %v526 = vpop.f32.mrf.mxu0
        %v527 = vadd.f32 %v433, %v526
        %528 = vdwg.mxu0
        %v529 = vadd.f32 %v495, %v498
        %v530 = vadd.f32 %v529, %v501
        %v531 = vrot.slane %v530, 4
        %v532 = vadd.f32 %v530, %v531
        %v533 = vrot.slane %v532, 2
        %v534 = vadd.f32 %v532, %v533
        %v535 = vrot.slane %v534, 1
        %v536 = vadd.f32 %v534, %v535
        %v537 = vadd.f32 %v521, %v524
        %v538 = vadd.f32 %v537, %v527
        %v539 = vrot.slane %v538, 4
        %v540 = vadd.f32 %v538, %v539
        %v541 = vrot.slane %v540, 2
        %v542 = vadd.f32 %v540, %v541
        %v543 = vrot.slane %v542, 1
        %v544 = vadd.f32 %v542, %v543
        %v545 = vrcp.pop 24.0
        %v546 = vmul.f32 24.0, %v545
        %v547 = vsub.f32 1.0, %v546
        %v548 = vmul.f32 %v545, %v547
        %v549 = vadd.f32 %v545, %v548
        %vm550 = vweird.f32 %v545
        %v551 = vsel %vm550, %v545, %v549
        %v552 = vmul.f32 %v536, %v551
        %v553 = vmul.f32 %v544, %v551
        %v554 = vsub.f32 %v495, %v552
        %v555 = vsub.f32 %v521, %v553
        %v556 = vsub.f32 %v498, %v552
        %v557 = vsub.f32 %v524, %v553
        %v558 = vsub.f32 %v501, %v552
        %v559 = vsub.f32 %v527, %v553
        %v560 = vmul.f32 %v554, %v554
        %v561 = vmul.f32 %v555, %v555
        %v562 = vmul.f32 %v556, %v556
        %v563 = vmul.f32 %v557, %v557
        %v564 = vmul.f32 %v558, %v558
        %v565 = vmul.f32 %v559, %v559
        %v566 = vadd.f32 %v560, %v562
        %v567 = vadd.f32 %v566, %v564
        %v568 = vrot.slane %v567, 4
        %v569 = vadd.f32 %v567, %v568
        %v570 = vrot.slane %v569, 2
        %v571 = vadd.f32 %v569, %v570
        %v572 = vrot.slane %v571, 1
        %v573 = vadd.f32 %v571, %v572
        %v574 = vadd.f32 %v561, %v563
        %v575 = vadd.f32 %v574, %v565
        %v576 = vrot.slane %v575, 4
        %v577 = vadd.f32 %v575, %v576
        %v578 = vrot.slane %v577, 2
        %v579 = vadd.f32 %v577, %v578
        %v580 = vrot.slane %v579, 1
        %v581 = vadd.f32 %v579, %v580
        %v582 = vmul.f32 %v573, %v551
        %v583 = vmul.f32 %v581, %v551
        %v584 = vadd.f32 %v582, 1e-05
        %v585 = vadd.f32 %v583, 1e-05
        %v586 = vrsqrt.pop %v584
        %v587 = vmul.f32 %v586, %v584
        %v588 = vmul.f32 %v587, %v586
        %v589 = vmul.f32 0.5, %v588
        %v590 = vsub.f32 1.5, %v589
        %v591 = vmul.f32 %v586, %v590
        %vm592 = vweird.f32 %v584
        %vm593 = vweird.f32 %v586
        %vm594 = vmor %vm592, %vm593
        %v595 = vsel %vm594, %v586, %v591
        %v596 = vrsqrt.pop %v585
        %v597 = vmul.f32 %v596, %v585
        %v598 = vmul.f32 %v597, %v596
        %v599 = vmul.f32 0.5, %v598
        %v600 = vsub.f32 1.5, %v599
        %v601 = vmul.f32 %v596, %v600
        %vm602 = vweird.f32 %v585
        %vm603 = vweird.f32 %v596
        %vm604 = vmor %vm602, %vm603
        %v605 = vsel %vm604, %v596, %v601
        %v606 = vmul.f32 %v554, %v595
        %v607 = vmul.f32 %v555, %v605
        %v608 = vmul.f32 %v556, %v595
        %v609 = vmul.f32 %v557, %v605
        %v610 = vmul.f32 %v558, %v595
        %v611 = vmul.f32 %v559, %v605
        %v612 = vld [vmem:[%s3] sm:$0x3f]
        %vm613 = vcmask 195584
        %v615 = vsel %vm613, %v612, 0
        %617 = vmatpush.msra.mxu0 0.0
        %618 = vmatpush.msra.mxu0 0.0
        %619 = vmatpush.msra.mxu0 0.0
        %620 = vmatpush.msra.mxu0 0.0
        %621 = vmatpush.msra.mxu0 0.0
        %622 = vmatpush.msra.mxu0 0.0
        %623 = vmatpush.msra.mxu0 0.0
        %624 = vmatpush.msra.mxu0 0.0
        %625 = vmatpush.msra.mxu0 0.0
        %626 = vmatpush.msra.mxu0 0.0
        %627 = vmatpush.msra.mxu0 0.0
        %628 = vmatpush.msra.mxu0 0.0
        %629 = vmatpush.msra.mxu0 0.0
        %630 = vmatpush.msra.mxu0 %v610
        %631 = vmatpush.msra.mxu0 %v608
        %632 = vmatpush.msra.mxu0 %v606
        %633 = vmatmul.f32.gmra.mxu0 %v615
        %v634 = vpop.f32.mrf.mxu0
        %v635 = vadd.f32 0.0, %v634
        %636 = vdwg.mxu0
        %637 = vmatpush.msra.mxu0 0.0
        %638 = vmatpush.msra.mxu0 0.0
        %639 = vmatpush.msra.mxu0 0.0
        %640 = vmatpush.msra.mxu0 0.0
        %641 = vmatpush.msra.mxu0 0.0
        %642 = vmatpush.msra.mxu0 0.0
        %643 = vmatpush.msra.mxu0 0.0
        %644 = vmatpush.msra.mxu0 0.0
        %645 = vmatpush.msra.mxu0 0.0
        %646 = vmatpush.msra.mxu0 0.0
        %647 = vmatpush.msra.mxu0 0.0
        %648 = vmatpush.msra.mxu0 0.0
        %649 = vmatpush.msra.mxu0 0.0
        %650 = vmatpush.msra.mxu0 %v611
        %651 = vmatpush.msra.mxu0 %v609
        %652 = vmatpush.msra.mxu0 %v607
        %653 = vmatmul.f32.gmra.mxu0 %v615
        %v654 = vpop.f32.mrf.mxu0
        %v655 = vadd.f32 0.0, %v654
        %656 = vdwg.mxu0
        %vm657 = vcmask 1045504
        %v658 = vsel %vm657, %v635, -inf
        %v659 = vrot.slane %v658, 4
        %v660 = vmax.f32 %v658, %v659
        %v661 = vrot.slane %v660, 2
        %v662 = vmax.f32 %v660, %v661
        %v663 = vrot.slane %v662, 1
        %v664 = vmax.f32 %v662, %v663
        %v665 = vsel %vm657, %v655, -inf
        %v666 = vrot.slane %v665, 4
        %v667 = vmax.f32 %v665, %v666
        %v668 = vrot.slane %v667, 2
        %v669 = vmax.f32 %v667, %v668
        %v670 = vrot.slane %v669, 1
        %v671 = vmax.f32 %v669, %v670
        %v672 = vsub.f32 %v635, %v664
        %v673 = vsub.f32 %v655, %v671
        %v674 = vmul.f32 %v672, 1.442695
        %v675 = vpow.pop %v674
        %v676 = vmul.f32 %v673, 1.442695
        %v677 = vpow.pop %v676
        %v678 = vsel %vm657, %v675, 0.0
        %v679 = vrot.slane %v678, 4
        %v680 = vadd.f32 %v678, %v679
        %v681 = vrot.slane %v680, 2
        %v682 = vadd.f32 %v680, %v681
        %v683 = vrot.slane %v682, 1
        %v684 = vadd.f32 %v682, %v683
        %v685 = vsel %vm657, %v677, 0.0
        %v686 = vrot.slane %v685, 4
        %v687 = vadd.f32 %v685, %v686
        %v688 = vrot.slane %v687, 2
        %v689 = vadd.f32 %v687, %v688
        %v690 = vrot.slane %v689, 1
        %v691 = vadd.f32 %v689, %v690
        %v692 = vrcp.pop %v684
        %v693 = vrcp.pop %v691
        %v694 = vmul.f32 %v675, %v692
        %v695 = vmul.f32 %v677, %v693
        %v696 = vlog2.pop %v684
        %v697 = vmul.f32 %v696, 0.6931472
        %v698 = vlog2.pop %v691
        %v699 = vmul.f32 %v698, 0.6931472
        %v700 = vsub.f32 %v672, %v697
        %v701 = vsub.f32 %v673, %v699
        %702 = vst [vmem:[%s365] sm:$0x3f] %v694
        %703 = vst [vmem:[%s365 + $0x8] sm:$0x3f] %v695
        %704 = vst [vmem:[%s372] sm:$0x3f] %v635
        %705 = vst [vmem:[%s372 + $0x8] sm:$0x3f] %v655
        %706 = vst [vmem:[%s401] sm:$0x3f] %v700
        %707 = vst [vmem:[%s401 + $0x8] sm:$0x3f] %v701
        %v708 = vld [vmem:[%s4] sm:$0x3f]
        %v709 = vld [vmem:[%s4 + $0x8] sm:$0x3f]
        %710 = vxpose.xlu0.b32.start [1/16] %v694, 128
        %711 = vxpose.xlu0.b32.cont [2/16] 0.0, 128
        %712 = vxpose.xlu0.b32.cont [3/16] 0.0, 128
        %713 = vxpose.xlu0.b32.cont [4/16] 0.0, 128
        %714 = vxpose.xlu0.b32.cont [5/16] 0.0, 128
        %715 = vxpose.xlu0.b32.cont [6/16] 0.0, 128
        %716 = vxpose.xlu0.b32.cont [7/16] 0.0, 128
        %717 = vxpose.xlu0.b32.cont [8/16] 0.0, 128
        %718 = vxpose.xlu0.b32.cont [9/16] 0.0, 128
        %719 = vxpose.xlu0.b32.cont [10/16] 0.0, 128
        %720 = vxpose.xlu0.b32.cont [11/16] 0.0, 128
        %721 = vxpose.xlu0.b32.cont [12/16] 0.0, 128
        %722 = vxpose.xlu0.b32.cont [13/16] 0.0, 128
        %723 = vxpose.xlu0.b32.cont [14/16] 0.0, 128
        %724 = vxpose.xlu0.b32.cont [15/16] 0.0, 128
        %725 = vxpose.xlu0.b32.end [16/16] 0.0, 128
        %v726 = vpop.trf.xlu0
        %v727 = vpop.trf.xlu0
        %v728 = vpop.trf.xlu0
        %v729 = vpop.trf.xlu0
        %v730 = vpop.trf.xlu0
        %v731 = vpop.trf.xlu0
        %v732 = vpop.trf.xlu0
        %v733 = vpop.trf.xlu0
        %v734 = vpop.trf.xlu0
        %v735 = vpop.trf.xlu0
        %v736 = vpop.trf.xlu0
        %v737 = vpop.trf.xlu0
        %v738 = vpop.trf.xlu0
        %v739 = vpop.trf.xlu0
        %v740 = vpop.trf.xlu0
        %v741 = vpop.trf.xlu0
        %742 = vxpose.xlu0.b32.start [1/16] %v695, 128
        %743 = vxpose.xlu0.b32.cont [2/16] 0.0, 128
        %744 = vxpose.xlu0.b32.cont [3/16] 0.0, 128
        %745 = vxpose.xlu0.b32.cont [4/16] 0.0, 128
        %746 = vxpose.xlu0.b32.cont [5/16] 0.0, 128
        %747 = vxpose.xlu0.b32.cont [6/16] 0.0, 128
        %748 = vxpose.xlu0.b32.cont [7/16] 0.0, 128
        %749 = vxpose.xlu0.b32.cont [8/16] 0.0, 128
        %750 = vxpose.xlu0.b32.cont [9/16] 0.0, 128
        %751 = vxpose.xlu0.b32.cont [10/16] 0.0, 128
        %752 = vxpose.xlu0.b32.cont [11/16] 0.0, 128
        %753 = vxpose.xlu0.b32.cont [12/16] 0.0, 128
        %754 = vxpose.xlu0.b32.cont [13/16] 0.0, 128
        %755 = vxpose.xlu0.b32.cont [14/16] 0.0, 128
        %756 = vxpose.xlu0.b32.cont [15/16] 0.0, 128
        %757 = vxpose.xlu0.b32.end [16/16] 0.0, 128
        %v758 = vpop.trf.xlu0
        %v759 = vpop.trf.xlu0
        %v760 = vpop.trf.xlu0
        %v761 = vpop.trf.xlu0
        %v762 = vpop.trf.xlu0
        %v763 = vpop.trf.xlu0
        %v764 = vpop.trf.xlu0
        %v765 = vpop.trf.xlu0
        %v766 = vpop.trf.xlu0
        %v767 = vpop.trf.xlu0
        %v768 = vpop.trf.xlu0
        %v769 = vpop.trf.xlu0
        %v770 = vpop.trf.xlu0
        %v771 = vpop.trf.xlu0
        %v772 = vpop.trf.xlu0
        %v773 = vpop.trf.xlu0
        %vm774 = vcmask 48128
        %v776 = vsel %vm774, %v726, 0
        %v779 = vsel %vm774, %v727, 0
        %v782 = vsel %vm774, %v728, 0
        %v785 = vsel %vm774, %v729, 0
        %v788 = vsel %vm774, %v730, 0
        %v791 = vsel %vm774, %v731, 0
        %v794 = vsel %vm774, %v732, 0
        %v797 = vsel %vm774, %v733, 0
        %v800 = vsel %vm774, %v734, 0
        %v803 = vsel %vm774, %v735, 0
        %v806 = vsel %vm774, %v736, 0
        %v809 = vsel %vm774, %v737, 0
        %v812 = vsel %vm774, %v738, 0
        %v815 = vsel %vm774, %v739, 0
        %v818 = vsel %vm774, %v740, 0
        %v821 = vsel %vm774, %v741, 0
        %v824 = vsel %vm774, %v758, 0
        %v827 = vsel %vm774, %v759, 0
        %v830 = vsel %vm774, %v760, 0
        %v833 = vsel %vm774, %v761, 0
        %v836 = vsel %vm774, %v762, 0
        %v839 = vsel %vm774, %v763, 0
        %v842 = vsel %vm774, %v764, 0
        %v845 = vsel %vm774, %v765, 0
        %v848 = vsel %vm774, %v766, 0
        %v851 = vsel %vm774, %v767, 0
        %v854 = vsel %vm774, %v768, 0
        %v857 = vsel %vm774, %v769, 0
        %v860 = vsel %vm774, %v770, 0
        %v863 = vsel %vm774, %v771, 0
        %v866 = vsel %vm774, %v772, 0
        %v869 = vsel %vm774, %v773, 0
        %v872 = vsel %vm657, %v708, 0
        %v875 = vsel %vm657, %v709, 0
        %877 = vmatpush.msra.mxu0 0.0
        %878 = vmatpush.msra.mxu0 0.0
        %879 = vmatpush.msra.mxu0 0.0
        %880 = vmatpush.msra.mxu0 0.0
        %881 = vmatpush.msra.mxu0 0.0
        %882 = vmatpush.msra.mxu0 0.0
        %883 = vmatpush.msra.mxu0 0.0
        %884 = vmatpush.msra.mxu0 0.0
        %885 = vmatpush.msra.mxu0 0.0
        %886 = vmatpush.msra.mxu0 0.0
        %887 = vmatpush.msra.mxu0 0.0
        %888 = vmatpush.msra.mxu0 0.0
        %889 = vmatpush.msra.mxu0 0.0
        %890 = vmatpush.msra.mxu0 0.0
        %891 = vmatpush.msra.mxu0 0.0
        %892 = vmatpush.msra.mxu0 %v872
        %893 = vmatmul.f32.gmra.mxu0 %v776
        %v894 = vpop.f32.mrf.mxu0
        %v895 = vadd.f32 0.0, %v894
        %896 = vmatmul.f32.gmra.mxu0 %v779
        %v897 = vpop.f32.mrf.mxu0
        %v898 = vadd.f32 0.0, %v897
        %899 = vmatmul.f32.gmra.mxu0 %v782
        %v900 = vpop.f32.mrf.mxu0
        %v901 = vadd.f32 0.0, %v900
        %902 = vmatmul.f32.gmra.mxu0 %v785
        %v903 = vpop.f32.mrf.mxu0
        %v904 = vadd.f32 0.0, %v903
        %905 = vmatmul.f32.gmra.mxu0 %v788
        %v906 = vpop.f32.mrf.mxu0
        %v907 = vadd.f32 0.0, %v906
        %908 = vmatmul.f32.gmra.mxu0 %v791
        %v909 = vpop.f32.mrf.mxu0
        %v910 = vadd.f32 0.0, %v909
        %911 = vmatmul.f32.gmra.mxu0 %v794
        %v912 = vpop.f32.mrf.mxu0
        %v913 = vadd.f32 0.0, %v912
        %914 = vmatmul.f32.gmra.mxu0 %v797
        %v915 = vpop.f32.mrf.mxu0
        %v916 = vadd.f32 0.0, %v915
        %917 = vmatmul.f32.gmra.mxu0 %v800
        %v918 = vpop.f32.mrf.mxu0
        %v919 = vadd.f32 0.0, %v918
        %920 = vmatmul.f32.gmra.mxu0 %v803
        %v921 = vpop.f32.mrf.mxu0
        %v922 = vadd.f32 0.0, %v921
        %923 = vmatmul.f32.gmra.mxu0 %v806
        %v924 = vpop.f32.mrf.mxu0
        %v925 = vadd.f32 0.0, %v924
        %926 = vmatmul.f32.gmra.mxu0 %v809
        %v927 = vpop.f32.mrf.mxu0
        %v928 = vadd.f32 0.0, %v927
        %929 = vmatmul.f32.gmra.mxu0 %v812
        %v930 = vpop.f32.mrf.mxu0
        %v931 = vadd.f32 0.0, %v930
        %932 = vmatmul.f32.gmra.mxu0 %v815
        %v933 = vpop.f32.mrf.mxu0
        %v934 = vadd.f32 0.0, %v933
        %935 = vmatmul.f32.gmra.mxu0 %v818
        %v936 = vpop.f32.mrf.mxu0
        %v937 = vadd.f32 0.0, %v936
        %938 = vmatmul.f32.gmra.mxu0 %v821
        %v939 = vpop.f32.mrf.mxu0
        %v940 = vadd.f32 0.0, %v939
        %941 = vmatmul.f32.gmra.mxu0 %v824
        %v942 = vpop.f32.mrf.mxu0
        %v943 = vadd.f32 0.0, %v942
        %944 = vmatmul.f32.gmra.mxu0 %v827
        %v945 = vpop.f32.mrf.mxu0
        %v946 = vadd.f32 0.0, %v945
        %947 = vmatmul.f32.gmra.mxu0 %v830
        %v948 = vpop.f32.mrf.mxu0
        %v949 = vadd.f32 0.0, %v948
        %950 = vmatmul.f32.gmra.mxu0 %v833
        %v951 = vpop.f32.mrf.mxu0
        %v952 = vadd.f32 0.0, %v951
        %953 = vmatmul.f32.gmra.mxu0 %v836
        %v954 = vpop.f32.mrf.mxu0
        %v955 = vadd.f32 0.0, %v954
        %956 = vmatmul.f32.gmra.mxu0 %v839
        %v957 = vpop.f32.mrf.mxu0
        %v958 = vadd.f32 0.0, %v957
        %959 = vmatmul.f32.gmra.mxu0 %v842
        %v960 = vpop.f32.mrf.mxu0
        %v961 = vadd.f32 0.0, %v960
        %962 = vmatmul.f32.gmra.mxu0 %v845
        %v963 = vpop.f32.mrf.mxu0
        %v964 = vadd.f32 0.0, %v963
        %965 = vmatmul.f32.gmra.mxu0 %v848
        %v966 = vpop.f32.mrf.mxu0
        %v967 = vadd.f32 0.0, %v966
        %968 = vmatmul.f32.gmra.mxu0 %v851
        %v969 = vpop.f32.mrf.mxu0
        %v970 = vadd.f32 0.0, %v969
        %971 = vmatmul.f32.gmra.mxu0 %v854
        %v972 = vpop.f32.mrf.mxu0
        %v973 = vadd.f32 0.0, %v972
        %974 = vmatmul.f32.gmra.mxu0 %v857
        %v975 = vpop.f32.mrf.mxu0
        %v976 = vadd.f32 0.0, %v975
        %977 = vmatmul.f32.gmra.mxu0 %v860
        %v978 = vpop.f32.mrf.mxu0
        %v979 = vadd.f32 0.0, %v978
        %980 = vmatmul.f32.gmra.mxu0 %v863
        %v981 = vpop.f32.mrf.mxu0
        %v982 = vadd.f32 0.0, %v981
        %983 = vmatmul.f32.gmra.mxu0 %v866
        %v984 = vpop.f32.mrf.mxu0
        %v985 = vadd.f32 0.0, %v984
        %986 = vmatmul.f32.gmra.mxu0 %v869
        %v987 = vpop.f32.mrf.mxu0
        %v988 = vadd.f32 0.0, %v987
        %989 = vdwg.mxu0
        %990 = vmatpush.msra.mxu0 0.0
        %991 = vmatpush.msra.mxu0 0.0
        %992 = vmatpush.msra.mxu0 0.0
        %993 = vmatpush.msra.mxu0 0.0
        %994 = vmatpush.msra.mxu0 0.0
        %995 = vmatpush.msra.mxu0 0.0
        %996 = vmatpush.msra.mxu0 0.0
        %997 = vmatpush.msra.mxu0 0.0
        %998 = vmatpush.msra.mxu0 0.0
        %999 = vmatpush.msra.mxu0 0.0
        %1000 = vmatpush.msra.mxu0 0.0
        %1001 = vmatpush.msra.mxu0 0.0
        %1002 = vmatpush.msra.mxu0 0.0
        %1003 = vmatpush.msra.mxu0 0.0
        %1004 = vmatpush.msra.mxu0 0.0
        %1005 = vmatpush.msra.mxu0 %v875
        %1006 = vmatmul.f32.gmra.mxu0 %v776
        %v1007 = vpop.f32.mrf.mxu0
        %v1008 = vadd.f32 0.0, %v1007
        %1009 = vmatmul.f32.gmra.mxu0 %v779
        %v1010 = vpop.f32.mrf.mxu0
        %v1011 = vadd.f32 0.0, %v1010
        %1012 = vmatmul.f32.gmra.mxu0 %v782
        %v1013 = vpop.f32.mrf.mxu0
        %v1014 = vadd.f32 0.0, %v1013
        %1015 = vmatmul.f32.gmra.mxu0 %v785
        %v1016 = vpop.f32.mrf.mxu0
        %v1017 = vadd.f32 0.0, %v1016
        %1018 = vmatmul.f32.gmra.mxu0 %v788
        %v1019 = vpop.f32.mrf.mxu0
        %v1020 = vadd.f32 0.0, %v1019
        %1021 = vmatmul.f32.gmra.mxu0 %v791
        %v1022 = vpop.f32.mrf.mxu0
        %v1023 = vadd.f32 0.0, %v1022
        %1024 = vmatmul.f32.gmra.mxu0 %v794
        %v1025 = vpop.f32.mrf.mxu0
        %v1026 = vadd.f32 0.0, %v1025
        %1027 = vmatmul.f32.gmra.mxu0 %v797
        %v1028 = vpop.f32.mrf.mxu0
        %v1029 = vadd.f32 0.0, %v1028
        %1030 = vmatmul.f32.gmra.mxu0 %v800
        %v1031 = vpop.f32.mrf.mxu0
        %v1032 = vadd.f32 0.0, %v1031
        %1033 = vmatmul.f32.gmra.mxu0 %v803
        %v1034 = vpop.f32.mrf.mxu0
        %v1035 = vadd.f32 0.0, %v1034
        %1036 = vmatmul.f32.gmra.mxu0 %v806
        %v1037 = vpop.f32.mrf.mxu0
        %v1038 = vadd.f32 0.0, %v1037
        %1039 = vmatmul.f32.gmra.mxu0 %v809
        %v1040 = vpop.f32.mrf.mxu0
        %v1041 = vadd.f32 0.0, %v1040
        %1042 = vmatmul.f32.gmra.mxu0 %v812
        %v1043 = vpop.f32.mrf.mxu0
        %v1044 = vadd.f32 0.0, %v1043
        %1045 = vmatmul.f32.gmra.mxu0 %v815
        %v1046 = vpop.f32.mrf.mxu0
        %v1047 = vadd.f32 0.0, %v1046
        %1048 = vmatmul.f32.gmra.mxu0 %v818
        %v1049 = vpop.f32.mrf.mxu0
        %v1050 = vadd.f32 0.0, %v1049
        %1051 = vmatmul.f32.gmra.mxu0 %v821
        %v1052 = vpop.f32.mrf.mxu0
        %v1053 = vadd.f32 0.0, %v1052
        %1054 = vmatmul.f32.gmra.mxu0 %v824
        %v1055 = vpop.f32.mrf.mxu0
        %v1056 = vadd.f32 0.0, %v1055
        %1057 = vmatmul.f32.gmra.mxu0 %v827
        %v1058 = vpop.f32.mrf.mxu0
        %v1059 = vadd.f32 0.0, %v1058
        %1060 = vmatmul.f32.gmra.mxu0 %v830
        %v1061 = vpop.f32.mrf.mxu0
        %v1062 = vadd.f32 0.0, %v1061
        %1063 = vmatmul.f32.gmra.mxu0 %v833
        %v1064 = vpop.f32.mrf.mxu0
        %v1065 = vadd.f32 0.0, %v1064
        %1066 = vmatmul.f32.gmra.mxu0 %v836
        %v1067 = vpop.f32.mrf.mxu0
        %v1068 = vadd.f32 0.0, %v1067
        %1069 = vmatmul.f32.gmra.mxu0 %v839
        %v1070 = vpop.f32.mrf.mxu0
        %v1071 = vadd.f32 0.0, %v1070
        %1072 = vmatmul.f32.gmra.mxu0 %v842
        %v1073 = vpop.f32.mrf.mxu0
        %v1074 = vadd.f32 0.0, %v1073
        %1075 = vmatmul.f32.gmra.mxu0 %v845
        %v1076 = vpop.f32.mrf.mxu0
        %v1077 = vadd.f32 0.0, %v1076
        %1078 = vmatmul.f32.gmra.mxu0 %v848
        %v1079 = vpop.f32.mrf.mxu0
        %v1080 = vadd.f32 0.0, %v1079
        %1081 = vmatmul.f32.gmra.mxu0 %v851
        %v1082 = vpop.f32.mrf.mxu0
        %v1083 = vadd.f32 0.0, %v1082
        %1084 = vmatmul.f32.gmra.mxu0 %v854
        %v1085 = vpop.f32.mrf.mxu0
        %v1086 = vadd.f32 0.0, %v1085
        %1087 = vmatmul.f32.gmra.mxu0 %v857
        %v1088 = vpop.f32.mrf.mxu0
        %v1089 = vadd.f32 0.0, %v1088
        %1090 = vmatmul.f32.gmra.mxu0 %v860
        %v1091 = vpop.f32.mrf.mxu0
        %v1092 = vadd.f32 0.0, %v1091
        %1093 = vmatmul.f32.gmra.mxu0 %v863
        %v1094 = vpop.f32.mrf.mxu0
        %v1095 = vadd.f32 0.0, %v1094
        %1096 = vmatmul.f32.gmra.mxu0 %v866
        %v1097 = vpop.f32.mrf.mxu0
        %v1098 = vadd.f32 0.0, %v1097
        %1099 = vmatmul.f32.gmra.mxu0 %v869
        %v1100 = vpop.f32.mrf.mxu0
        %v1101 = vadd.f32 0.0, %v1100
        %1102 = vdwg.mxu0
        %1103 = vst [vmem:[%s389] sm:$0xff] %v895
        %1104 = vst [vmem:[%s389 + $0x8] sm:$0xff] %v1008
        %1105 = vst [vmem:[%s389 + $0x10] sm:$0xff] %v898
        %1106 = vst [vmem:[%s389 + $0x18] sm:$0xff] %v1011
        %1107 = vst [vmem:[%s389 + $0x20] sm:$0xff] %v901
        %1108 = vst [vmem:[%s389 + $0x28] sm:$0xff] %v1014
        %1109 = vst [vmem:[%s389 + $0x30] sm:$0xff] %v904
        %1110 = vst [vmem:[%s389 + $0x38] sm:$0xff] %v1017
        %1111 = vst [vmem:[%s389 + $0x40] sm:$0xff] %v907
        %1112 = vst [vmem:[%s389 + $0x48] sm:$0xff] %v1020
        %1113 = vst [vmem:[%s389 + $0x50] sm:$0xff] %v910
        %1114 = vst [vmem:[%s389 + $0x58] sm:$0xff] %v1023
        %1115 = vst [vmem:[%s389 + $0x60] sm:$0xff] %v913
        %1116 = vst [vmem:[%s389 + $0x68] sm:$0xff] %v1026
        %1117 = vst [vmem:[%s389 + $0x70] sm:$0xff] %v916
        %1118 = vst [vmem:[%s389 + $0x78] sm:$0xff] %v1029
        %1119 = vst [vmem:[%s389 + $0x80] sm:$0xff] %v919
        %1120 = vst [vmem:[%s389 + $0x88] sm:$0xff] %v1032
        %1121 = vst [vmem:[%s389 + $0x90] sm:$0xff] %v922
        %1122 = vst [vmem:[%s389 + $0x98] sm:$0xff] %v1035
        %1123 = vst [vmem:[%s389 + $0xa0] sm:$0xff] %v925
        %1124 = vst [vmem:[%s389 + $0xa8] sm:$0xff] %v1038
        %1125 = vst [vmem:[%s389 + $0xb0] sm:$0xff] %v928
        %1126 = vst [vmem:[%s389 + $0xb8] sm:$0xff] %v1041
        %1127 = vst [vmem:[%s389 + $0xc0] sm:$0xff] %v931
        %1128 = vst [vmem:[%s389 + $0xc8] sm:$0xff] %v1044
        %1129 = vst [vmem:[%s389 + $0xd0] sm:$0xff] %v934
        %1130 = vst [vmem:[%s389 + $0xd8] sm:$0xff] %v1047
        %1131 = vst [vmem:[%s389 + $0xe0] sm:$0xff] %v937
        %1132 = vst [vmem:[%s389 + $0xe8] sm:$0xff] %v1050
        %1133 = vst [vmem:[%s389 + $0xf0] sm:$0xff] %v940
        %1134 = vst [vmem:[%s389 + $0xf8] sm:$0xff] %v1053
        %1135 = vst [vmem:[%s389 + $0x100] sm:$0xff] %v943
        %1136 = vst [vmem:[%s389 + $0x108] sm:$0xff] %v1056
        %1137 = vst [vmem:[%s389 + $0x110] sm:$0xff] %v946
        %1138 = vst [vmem:[%s389 + $0x118] sm:$0xff] %v1059
        %1139 = vst [vmem:[%s389 + $0x120] sm:$0xff] %v949
        %1140 = vst [vmem:[%s389 + $0x128] sm:$0xff] %v1062
        %1141 = vst [vmem:[%s389 + $0x130] sm:$0xff] %v952
        %1142 = vst [vmem:[%s389 + $0x138] sm:$0xff] %v1065
        %1143 = vst [vmem:[%s389 + $0x140] sm:$0xff] %v955
        %1144 = vst [vmem:[%s389 + $0x148] sm:$0xff] %v1068
        %1145 = vst [vmem:[%s389 + $0x150] sm:$0xff] %v958
        %1146 = vst [vmem:[%s389 + $0x158] sm:$0xff] %v1071
        %1147 = vst [vmem:[%s389 + $0x160] sm:$0xff] %v961
        %1148 = vst [vmem:[%s389 + $0x168] sm:$0xff] %v1074
        %1149 = vst [vmem:[%s389 + $0x170] sm:$0xff] %v964
        %1150 = vst [vmem:[%s389 + $0x178] sm:$0xff] %v1077
        %1151 = vst [vmem:[%s389 + $0x180] sm:$0xff] %v967
        %1152 = vst [vmem:[%s389 + $0x188] sm:$0xff] %v1080
        %1153 = vst [vmem:[%s389 + $0x190] sm:$0xff] %v970
        %1154 = vst [vmem:[%s389 + $0x198] sm:$0xff] %v1083
        %1155 = vst [vmem:[%s389 + $0x1a0] sm:$0xff] %v973
        %1156 = vst [vmem:[%s389 + $0x1a8] sm:$0xff] %v1086
        %1157 = vst [vmem:[%s389 + $0x1b0] sm:$0xff] %v976
        %1158 = vst [vmem:[%s389 + $0x1b8] sm:$0xff] %v1089
        %1159 = vst [vmem:[%s389 + $0x1c0] sm:$0xff] %v979
        %1160 = vst [vmem:[%s389 + $0x1c8] sm:$0xff] %v1092
        %1161 = vst [vmem:[%s389 + $0x1d0] sm:$0xff] %v982
        %1162 = vst [vmem:[%s389 + $0x1d8] sm:$0xff] %v1095
        %1163 = vst [vmem:[%s389 + $0x1e0] sm:$0xff] %v985
        %1164 = vst [vmem:[%s389 + $0x1e8] sm:$0xff] %v1098
        %1165 = vst [vmem:[%s389 + $0x1f0] sm:$0xff] %v988
        %1166 = vst [vmem:[%s389 + $0x1f8] sm:$0xff] %v1101
        %s1167 = sand.u32 %s160, 1
        %s1168 = scalar_lea.sflag [#allocation4], %s1167
        %s1169 = sand.u32 %s160, 1
        %s1170 = smul.addr %s1169, 16
        %s1171 = scalar_lea.vmem [#allocation3], %s1170
        %s1172 = sand.u32 %s188, 1
        %s1173 = scalar_lea.sflag [#allocation6], %s1172
        %s1174 = sand.u32 %s188, 1
        %s1175 = smul.addr %s1174, 16
        %s1176 = scalar_lea.vmem [#allocation5], %s1175
        %s1177 = smul.u32 2, %s31
        %p1178 = scmp.lt.s32.totalorder %s30, 1
        %s1179 = scalar_select %p1178, %s30, 1
        %p1180 = scmp.lt.s32.totalorder %s1177, 3
        %s1181 = scalar_select %p1180, %s1177, 3
        %s1182 = smul.addr %s1179, 4
        %s1183 = sadd.s32 %s1181, %s1182
        %s1184 = smul.addr %s1183, 8
        %s1185 = scalar_lea.vmem %s7, %s1184
        %s1186 = sand.u32 %s244, 1
        %s1187 = sand.u32 %s244, 1
        %s1188 = smul.addr %s1187, 512
        %s1189 = scalar_lea.vmem [#allocation7], %s1188
        // Predicated region
        $region64: #{selection_forward.1} parent=58 // pred_check
          %p1190 = pneg %p170
        $region65: #{selection_forward.1} parent=58 // pred_check_branch
          %1192 = sbr.rel (%p1190) target = $region67
        $region66: #{selection_forward.1} parent=58 // pred_region
          %s1193 = smul.u32 2, %s31
          %1195 = vsyncadd %s1168, 0
          %s1196 = smul.addr %s30, 4
          %s1197 = sadd.s32 %s1193, %s1196
          %s1198 = smul.addr %s1197, 8
          %s1199 = scalar_lea.hbm %s5, %s1198
          %s1201 = sshll.u32 %s1171, 4
          %s1202 = int_to_ptr.vmem [resolvable:$true] %s1201
          %s1203 = sshll.u32 %s1199, 4
          %s1204 = int_to_ptr.hbm [resolvable:$true] %s1203
          %1206 = dma.vmem_to_hbm [thread:$0]  %s1202, 256, %s1204, %s1168
        $region67: #{selection_forward.1} parent=58 // pred_fallthru
          _
        // Predicated region
        $region68: #{selection_forward.1} parent=58 // pred_check
          %p1207 = pneg %p198
        $region69: #{selection_forward.1} parent=58 // pred_check_branch
          %1209 = sbr.rel (%p1207) target = $region71
        $region70: #{selection_forward.1} parent=58 // pred_region
          %s1210 = smul.u32 2, %s31
          %1212 = vsyncadd %s1173, 0
          %s1213 = smul.addr %s30, 4
          %s1214 = sadd.s32 %s1210, %s1213
          %s1215 = smul.addr %s1214, 8
          %s1216 = scalar_lea.hbm %s6, %s1215
          %s1218 = sshll.u32 %s1176, 4
          %s1219 = int_to_ptr.vmem [resolvable:$true] %s1218
          %s1220 = sshll.u32 %s1216, 4
          %s1221 = int_to_ptr.hbm [resolvable:$true] %s1220
          %1223 = dma.vmem_to_hbm [thread:$0]  %s1219, 256, %s1221, %s1173
        $region71: #{selection_forward.1} parent=58 // pred_fallthru
          _
        // Predicated region
        $region72: #{selection_forward.1} parent=58 // pred_check
          %p1224 = pneg %p226
        $region73: #{selection_forward.1} parent=58 // pred_check_branch
          %1226 = sbr.rel (%p1224) target = $region75
        $region74: #{selection_forward.1} parent=58 // pred_region
          %s1227 = smul.u32 2, %s31
        $region75: #{selection_forward.1} parent=58 // pred_fallthru
          _
        // Predicated region
        $region76: #{selection_forward.1} parent=58 // pred_check
          %p1228 = pneg %p254
        $region77: #{selection_forward.1} parent=58 // pred_check_branch
          %1230 = sbr.rel (%p1228) target = $region79
        $region78: #{selection_forward.1} parent=58 // pred_region
          %s1231 = smul.u32 32, %s31
          %s1232 = smul.u32 2, %s30
          %s1233 = smul.addr %s1231, 4
          %s1234 = sadd.s32 %s1232, %s1233
          %s1235 = smul.addr %s1234, 8
          %s1236 = scalar_lea.vmem %s8, %s1235
          // Predicated region
          $region80: #{selection_forward.1} parent=78 // pred_check
            _
          $region81: #{selection_forward.1} parent=78 // pred_check_branch
            %1238 = sbr.rel (0) target = $region83
          $region82: #{selection_forward.1} parent=78 // pred_region
            // Predicated region
            $region84: #{selection_forward.1} parent=82 // pred_check
              _
            $region85: #{selection_forward.1} parent=82 // pred_check_branch
              %1240 = sbr.rel (0) target = $region87
            $region86: #{selection_forward.1} parent=82 // pred_region
              loop: start=0, step=1, limit=1
              $region88: #{selection_forward.1} parent=86 // loop_pre_header
                _
              $region89: #{selection_forward.1} parent=86 // loop_header
                %s1242 = sphi 0, %s1246
                %p1243 = scmp.ge.s32.totalorder %s1242, 1
                %s1247 = sphi %s1189, %s1189
                %s1248 = sphi %s1236, %s1236
              $region90: #{selection_forward.1} parent=86 // loop_header_branch
                %1245 = sbr.rel (%p1243) target = $region94
              $region91: #{selection_forward.1} parent=86 // loop_body
                %v1249 = vld [vmem:[%s1247] sm:$0xff]
                %1250 = vst [vmem:[%s1248] sm:$0xff] %v1249
                %v1251 = vld [vmem:[%s1247 + $0x8] sm:$0xff]
                %1252 = vst [vmem:[%s1248 + $0x8] sm:$0xff] %v1251
                %v1253 = vld [vmem:[%s1247 + $0x10] sm:$0xff]
                %1254 = vst [vmem:[%s1248 + $0x20] sm:$0xff] %v1253
                %v1255 = vld [vmem:[%s1247 + $0x18] sm:$0xff]
                %1256 = vst [vmem:[%s1248 + $0x28] sm:$0xff] %v1255
                %v1257 = vld [vmem:[%s1247 + $0x20] sm:$0xff]
                %1258 = vst [vmem:[%s1248 + $0x40] sm:$0xff] %v1257
                %v1259 = vld [vmem:[%s1247 + $0x28] sm:$0xff]
                %1260 = vst [vmem:[%s1248 + $0x48] sm:$0xff] %v1259
                %v1261 = vld [vmem:[%s1247 + $0x30] sm:$0xff]
                %1262 = vst [vmem:[%s1248 + $0x60] sm:$0xff] %v1261
                %v1263 = vld [vmem:[%s1247 + $0x38] sm:$0xff]
                %1264 = vst [vmem:[%s1248 + $0x68] sm:$0xff] %v1263
                %v1265 = vld [vmem:[%s1247 + $0x40] sm:$0xff]
                %1266 = vst [vmem:[%s1248 + $0x80] sm:$0xff] %v1265
                %v1267 = vld [vmem:[%s1247 + $0x48] sm:$0xff]
                %1268 = vst [vmem:[%s1248 + $0x88] sm:$0xff] %v1267
                %v1269 = vld [vmem:[%s1247 + $0x50] sm:$0xff]
                %1270 = vst [vmem:[%s1248 + $0xa0] sm:$0xff] %v1269
                %v1271 = vld [vmem:[%s1247 + $0x58] sm:$0xff]
                %1272 = vst [vmem:[%s1248 + $0xa8] sm:$0xff] %v1271
                %v1273 = vld [vmem:[%s1247 + $0x60] sm:$0xff]
                %1274 = vst [vmem:[%s1248 + $0xc0] sm:$0xff] %v1273
                %v1275 = vld [vmem:[%s1247 + $0x68] sm:$0xff]
                %1276 = vst [vmem:[%s1248 + $0xc8] sm:$0xff] %v1275
                %v1277 = vld [vmem:[%s1247 + $0x70] sm:$0xff]
                %1278 = vst [vmem:[%s1248 + $0xe0] sm:$0xff] %v1277
                %v1279 = vld [vmem:[%s1247 + $0x78] sm:$0xff]
                %1280 = vst [vmem:[%s1248 + $0xe8] sm:$0xff] %v1279
                %v1281 = vld [vmem:[%s1247 + $0x80] sm:$0xff]
                %1282 = vst [vmem:[%s1248 + $0x100] sm:$0xff] %v1281
                %v1283 = vld [vmem:[%s1247 + $0x88] sm:$0xff]
                %1284 = vst [vmem:[%s1248 + $0x108] sm:$0xff] %v1283
                %v1285 = vld [vmem:[%s1247 + $0x90] sm:$0xff]
                %1286 = vst [vmem:[%s1248 + $0x120] sm:$0xff] %v1285
                %v1287 = vld [vmem:[%s1247 + $0x98] sm:$0xff]
                %1288 = vst [vmem:[%s1248 + $0x128] sm:$0xff] %v1287
                %v1289 = vld [vmem:[%s1247 + $0xa0] sm:$0xff]
                %1290 = vst [vmem:[%s1248 + $0x140] sm:$0xff] %v1289
                %v1291 = vld [vmem:[%s1247 + $0xa8] sm:$0xff]
                %1292 = vst [vmem:[%s1248 + $0x148] sm:$0xff] %v1291
                %v1293 = vld [vmem:[%s1247 + $0xb0] sm:$0xff]
                %1294 = vst [vmem:[%s1248 + $0x160] sm:$0xff] %v1293
                %v1295 = vld [vmem:[%s1247 + $0xb8] sm:$0xff]
                %1296 = vst [vmem:[%s1248 + $0x168] sm:$0xff] %v1295
                %v1297 = vld [vmem:[%s1247 + $0xc0] sm:$0xff]
                %1298 = vst [vmem:[%s1248 + $0x180] sm:$0xff] %v1297
                %v1299 = vld [vmem:[%s1247 + $0xc8] sm:$0xff]
                %1300 = vst [vmem:[%s1248 + $0x188] sm:$0xff] %v1299
                %v1301 = vld [vmem:[%s1247 + $0xd0] sm:$0xff]
                %1302 = vst [vmem:[%s1248 + $0x1a0] sm:$0xff] %v1301
                %v1303 = vld [vmem:[%s1247 + $0xd8] sm:$0xff]
                %1304 = vst [vmem:[%s1248 + $0x1a8] sm:$0xff] %v1303
                %v1305 = vld [vmem:[%s1247 + $0xe0] sm:$0xff]
                %1306 = vst [vmem:[%s1248 + $0x1c0] sm:$0xff] %v1305
                %v1307 = vld [vmem:[%s1247 + $0xe8] sm:$0xff]
                %1308 = vst [vmem:[%s1248 + $0x1c8] sm:$0xff] %v1307
                %v1309 = vld [vmem:[%s1247 + $0xf0] sm:$0xff]
                %1310 = vst [vmem:[%s1248 + $0x1e0] sm:$0xff] %v1309
                %v1311 = vld [vmem:[%s1247 + $0xf8] sm:$0xff]
                %1312 = vst [vmem:[%s1248 + $0x1e8] sm:$0xff] %v1311
                %v1313 = vld [vmem:[%s1247 + $0x100] sm:$0xff]
                %1314 = vst [vmem:[%s1248 + $0x200] sm:$0xff] %v1313
                %v1315 = vld [vmem:[%s1247 + $0x108] sm:$0xff]
                %1316 = vst [vmem:[%s1248 + $0x208] sm:$0xff] %v1315
                %v1317 = vld [vmem:[%s1247 + $0x110] sm:$0xff]
                %1318 = vst [vmem:[%s1248 + $0x220] sm:$0xff] %v1317
                %v1319 = vld [vmem:[%s1247 + $0x118] sm:$0xff]
                %1320 = vst [vmem:[%s1248 + $0x228] sm:$0xff] %v1319
                %v1321 = vld [vmem:[%s1247 + $0x120] sm:$0xff]
                %1322 = vst [vmem:[%s1248 + $0x240] sm:$0xff] %v1321
                %v1323 = vld [vmem:[%s1247 + $0x128] sm:$0xff]
                %1324 = vst [vmem:[%s1248 + $0x248] sm:$0xff] %v1323
                %v1325 = vld [vmem:[%s1247 + $0x130] sm:$0xff]
                %1326 = vst [vmem:[%s1248 + $0x260] sm:$0xff] %v1325
                %v1327 = vld [vmem:[%s1247 + $0x138] sm:$0xff]
                %1328 = vst [vmem:[%s1248 + $0x268] sm:$0xff] %v1327
                %v1329 = vld [vmem:[%s1247 + $0x140] sm:$0xff]
                %1330 = vst [vmem:[%s1248 + $0x280] sm:$0xff] %v1329
                %v1331 = vld [vmem:[%s1247 + $0x148] sm:$0xff]
                %1332 = vst [vmem:[%s1248 + $0x288] sm:$0xff] %v1331
                %v1333 = vld [vmem:[%s1247 + $0x150] sm:$0xff]
                %1334 = vst [vmem:[%s1248 + $0x2a0] sm:$0xff] %v1333
                %v1335 = vld [vmem:[%s1247 + $0x158] sm:$0xff]
                %1336 = vst [vmem:[%s1248 + $0x2a8] sm:$0xff] %v1335
                %v1337 = vld [vmem:[%s1247 + $0x160] sm:$0xff]
                %1338 = vst [vmem:[%s1248 + $0x2c0] sm:$0xff] %v1337
                %v1339 = vld [vmem:[%s1247 + $0x168] sm:$0xff]
                %1340 = vst [vmem:[%s1248 + $0x2c8] sm:$0xff] %v1339
                %v1341 = vld [vmem:[%s1247 + $0x170] sm:$0xff]
                %1342 = vst [vmem:[%s1248 + $0x2e0] sm:$0xff] %v1341
                %v1343 = vld [vmem:[%s1247 + $0x178] sm:$0xff]
                %1344 = vst [vmem:[%s1248 + $0x2e8] sm:$0xff] %v1343
                %v1345 = vld [vmem:[%s1247 + $0x180] sm:$0xff]
                %1346 = vst [vmem:[%s1248 + $0x300] sm:$0xff] %v1345
                %v1347 = vld [vmem:[%s1247 + $0x188] sm:$0xff]
                %1348 = vst [vmem:[%s1248 + $0x308] sm:$0xff] %v1347
                %v1349 = vld [vmem:[%s1247 + $0x190] sm:$0xff]
                %1350 = vst [vmem:[%s1248 + $0x320] sm:$0xff] %v1349
                %v1351 = vld [vmem:[%s1247 + $0x198] sm:$0xff]
                %1352 = vst [vmem:[%s1248 + $0x328] sm:$0xff] %v1351
                %v1353 = vld [vmem:[%s1247 + $0x1a0] sm:$0xff]
                %1354 = vst [vmem:[%s1248 + $0x340] sm:$0xff] %v1353
                %v1355 = vld [vmem:[%s1247 + $0x1a8] sm:$0xff]
                %1356 = vst [vmem:[%s1248 + $0x348] sm:$0xff] %v1355
                %v1357 = vld [vmem:[%s1247 + $0x1b0] sm:$0xff]
                %1358 = vst [vmem:[%s1248 + $0x360] sm:$0xff] %v1357
                %v1359 = vld [vmem:[%s1247 + $0x1b8] sm:$0xff]
                %1360 = vst [vmem:[%s1248 + $0x368] sm:$0xff] %v1359
                %v1361 = vld [vmem:[%s1247 + $0x1c0] sm:$0xff]
                %1362 = vst [vmem:[%s1248 + $0x380] sm:$0xff] %v1361
                %v1363 = vld [vmem:[%s1247 + $0x1c8] sm:$0xff]
                %1364 = vst [vmem:[%s1248 + $0x388] sm:$0xff] %v1363
                %v1365 = vld [vmem:[%s1247 + $0x1d0] sm:$0xff]
                %1366 = vst [vmem:[%s1248 + $0x3a0] sm:$0xff] %v1365
                %v1367 = vld [vmem:[%s1247 + $0x1d8] sm:$0xff]
                %1368 = vst [vmem:[%s1248 + $0x3a8] sm:$0xff] %v1367
                %v1369 = vld [vmem:[%s1247 + $0x1e0] sm:$0xff]
                %1370 = vst [vmem:[%s1248 + $0x3c0] sm:$0xff] %v1369
                %v1371 = vld [vmem:[%s1247 + $0x1e8] sm:$0xff]
                %1372 = vst [vmem:[%s1248 + $0x3c8] sm:$0xff] %v1371
                %v1373 = vld [vmem:[%s1247 + $0x1f0] sm:$0xff]
                %1374 = vst [vmem:[%s1248 + $0x3e0] sm:$0xff] %v1373
                %v1375 = vld [vmem:[%s1247 + $0x1f8] sm:$0xff]
                %1376 = vst [vmem:[%s1248 + $0x3e8] sm:$0xff] %v1375
              $region92: #{selection_forward.1} parent=86 // loop_footer
                %s1246 = sadd.s32 1, %s1242
              $region93: #{selection_forward.1} parent=86 // loop_footer_branch
                %1241 = sbr.rel target = $region89
              $region94: #{selection_forward.1} parent=86 // loop_exit
                _
            $region87: #{selection_forward.1} parent=82 // pred_fallthru
              _
            // Predicated region
            $region95: #{selection_forward.1} parent=82 // pred_check
              _
            $region96: #{selection_forward.1} parent=82 // pred_check_branch
              %1378 = sbr.rel target = $region98
            $region97: #{selection_forward.1} parent=82 // pred_region
              _
            $region98: #{selection_forward.1} parent=82 // pred_fallthru
              _
          $region83: #{selection_forward.1} parent=78 // pred_fallthru
            _
          %1379 = vnop
        $region79: #{selection_forward.1} parent=58 // pred_fallthru
          _
      $region59: #{selection_forward.1} parent=5 // pred_fallthru
        _
      %p1380 = scmp.le.s32.totalorder 2, %s21
      // Predicated region
      $region99: #{selection_forward.1} parent=5 // pred_check
        %p1381 = pneg %p1380
      $region100: #{selection_forward.1} parent=5 // pred_check_branch
        %1383 = sbr.rel (%p1381) target = $region102
      $region101: #{selection_forward.1} parent=5 // pred_region
        %s1384 = ssub.s32 %s21, 2
        // Predicated region
        $region103: #{selection_forward.1} parent=101 // pred_check
          %p1385 = pneg %p176
        $region104: #{selection_forward.1} parent=101 // pred_check_branch
          %1387 = sbr.rel (%p1385) target = $region106
        $region105: #{selection_forward.1} parent=101 // pred_region
          %s1388 = sand.u32 %s161, 1
          %s1389 = scalar_lea.sflag [#allocation4], %s1388
          %s1390 = sand.u32 %s161, 1
          %s1391 = smul.addr %s1390, 16
          %s1392 = scalar_lea.vmem [#allocation3], %s1391
          %1394 = dma.done %s1389, 256
        $region106: #{selection_forward.1} parent=101 // pred_fallthru
          _
        // Predicated region
        $region107: #{selection_forward.1} parent=101 // pred_check
          %p1395 = pneg %p204
        $region108: #{selection_forward.1} parent=101 // pred_check_branch
          %1397 = sbr.rel (%p1395) target = $region110
        $region109: #{selection_forward.1} parent=101 // pred_region
          %s1398 = sand.u32 %s189, 1
          %s1399 = scalar_lea.sflag [#allocation6], %s1398
          %s1400 = sand.u32 %s189, 1
          %s1401 = smul.addr %s1400, 16
          %s1402 = scalar_lea.vmem [#allocation5], %s1401
          %1404 = dma.done %s1399, 256
        $region110: #{selection_forward.1} parent=101 // pred_fallthru
          _
        // Predicated region
        $region111: #{selection_forward.1} parent=101 // pred_check
          %p1405 = pneg %p232
        $region112: #{selection_forward.1} parent=101 // pred_check_branch
          %1407 = sbr.rel (%p1405) target = $region114
        $region113: #{selection_forward.1} parent=101 // pred_region
          %s1408 = smul.u32 2, %s33
          %p1409 = scmp.lt.s32.totalorder %s32, 1
          %s1410 = scalar_select %p1409, %s32, 1
          %p1411 = scmp.lt.s32.totalorder %s1408, 3
          %s1412 = scalar_select %p1411, %s1408, 3
          %s1413 = smul.addr %s1410, 4
          %s1414 = sadd.s32 %s1412, %s1413
          %s1415 = smul.addr %s1414, 8
          %s1416 = scalar_lea.vmem %s7, %s1415
        $region114: #{selection_forward.1} parent=101 // pred_fallthru
          _
        // Predicated region
        $region115: #{selection_forward.1} parent=101 // pred_check
          %p1417 = pneg %p260
        $region116: #{selection_forward.1} parent=101 // pred_check_branch
          %1419 = sbr.rel (%p1417) target = $region118
        $region117: #{selection_forward.1} parent=101 // pred_region
          %s1420 = sand.u32 %s245, 1
          %s1421 = sand.u32 %s245, 1
          %s1422 = smul.addr %s1421, 512
          %s1423 = scalar_lea.vmem [#allocation7], %s1422
        $region118: #{selection_forward.1} parent=101 // pred_fallthru
          _
      $region102: #{selection_forward.1} parent=5 // pred_fallthru
        _
    $region6: #{selection_forward.1} parent=1 // loop_footer
      %s25 = sadd.s32 1, %s21
    $region7: #{selection_forward.1} parent=1 // loop_footer_branch
      %20 = sbr.rel target = $region3
    $region8: #{selection_forward.1} parent=1 // loop_exit
      _
    %1424 = vsyncpa [#allocation4], 1
    %s1425 = scalar_lea.sflag [#allocation4], 1
    %1426 = vsyncpa %s1425, 1
    %1427 = vsyncpa [#allocation6], 1
    %s1428 = scalar_lea.sflag [#allocation6], 1
    %1429 = vsyncpa %s1428, 1

</llo_original>
